<compile_context>
chip_gen: v7x
topology: tpu7x:2x2x1
jax: 0.10.0
libtpu: 0.0.40
codegen_flags: <defaults>
</compile_context>

<pallas_src>
import functools

import jax
import jax.numpy as jnp
from jax.experimental import pallas as pl
from jax.experimental.pallas import tpu as pltpu


# ---------------------------------------------------------------------------
# Small helpers
# ---------------------------------------------------------------------------
def _round_up(x, m):
    return (x + m - 1) // m * m


def _sublane_pack(dtype):
    # Sublane packing factor: 8 (f32), 16 (bf16), 32 (int8/fp8).
    return max(8, 32 // jnp.dtype(dtype).itemsize)


def _vmem_physical_bytes():
    try:
        return int(pltpu.get_tpu_info().vmem_capacity_bytes)
    except Exception:
        # Conservative fallback (v7x per-TC size). Only affects plan selection,
        # never correctness.
        return 64 << 20


def _vmem_budget_bytes():
    # ~78% of physical: leaves headroom for compiler-internal scratch, which
    # matters on v7x's 64 MiB per-TC VMEM.
    return int(_vmem_physical_bytes() * 0.78)


# --- pl.Buffered(1) feature probe (single-buffered constant blocks) ---------
_BUFFERED1_OK = None


def _buffered1_supported():
    """Probe (once) whether pipeline_mode=pl.Buffered(1) compiles and runs here."""
    global _BUFFERED1_OK
    if _BUFFERED1_OK is not None:
        return _BUFFERED1_OK

    def _probe_kernel(x_ref, o_ref):
        o_ref[...] = x_ref[...] * 2.0

    try:
        with jax.ensure_compile_time_eval():
            spec = pl.BlockSpec((8, 128), lambda i: (0, 0),
                                pipeline_mode=pl.Buffered(1))
            f = pl.pallas_call(
                _probe_kernel,
                out_shape=jax.ShapeDtypeStruct((16, 128), jnp.float32),
                grid=(2,),
                in_specs=[spec],
                out_specs=pl.BlockSpec((8, 128), lambda i: (i, 0)),
            )
            jax.block_until_ready(f(jnp.ones((8, 128), jnp.float32)))
        _BUFFERED1_OK = True
    except Exception:
        _BUFFERED1_OK = False
    return _BUFFERED1_OK


def _const_spec(shape):
    """BlockSpec for a VMEM-resident weight/bias: constant index map, and
    single-buffered when supported (constant blocks need no double buffering)."""
    const = lambda i: (0, 0)
    if _buffered1_supported():
        return pl.BlockSpec(shape, const, pipeline_mode=pl.Buffered(1))
    return pl.BlockSpec(shape, const)


def _weight_bufs():
    return 1 if _buffered1_supported() else 2


def _brow(b):
    return b.astype(jnp.float32).reshape(1, -1)


# ---------------------------------------------------------------------------
# Fused whole-autoencoder kernel: grid over batch tiles only, weights resident.
# ---------------------------------------------------------------------------
def _fused_ae_kernel(x_ref,
                     we1_ref, be1_ref, we3_ref, be3_ref,
                     wd1_ref, bd1_ref, wd3_ref, bd3_ref,
                     enc_ref, dec_ref):
    f32 = jnp.float32
    x = x_ref[...]

    # encoder_fc1 + ReLU  (dropout is identity in eval forward)
    h1 = jnp.dot(x, we1_ref[...], preferred_element_type=f32)
    h1 = jnp.maximum(h1 + be1_ref[...], 0.0).astype(we3_ref.dtype)

    # encoder_fc3 -> encoded
    enc = jnp.dot(h1, we3_ref[...], preferred_element_type=f32) + be3_ref[...]
    enc_ref[...] = enc.astype(enc_ref.dtype)

    # decoder_fc1 + ReLU
    h2 = jnp.dot(enc.astype(wd1_ref.dtype), wd1_ref[...],
                 preferred_element_type=f32)
    h2 = jnp.maximum(h2 + bd1_ref[...], 0.0).astype(wd3_ref.dtype)

    # decoder_fc3 -> decoded
    dec = jnp.dot(h2, wd3_ref[...], preferred_element_type=f32) + bd3_ref[...]
    dec_ref[...] = dec.astype(dec_ref.dtype)


def _fused_vmem_bytes(tm, d_in, h, e, compute_dtype, weight_bufs):
    """Rough VMEM footprint of the fused, weight-resident plan."""
    wb = jnp.dtype(compute_dtype).itemsize
    weights = (d_in * h + h * e + e * h + h * d_in) * wb * weight_bufs
    biases = (h + e + h + d_in) * 4 * weight_bufs
    x_io = 2 * tm * d_in * wb                 # double-buffered input tile
    out_io = 2 * tm * (e + d_in) * 4          # double-buffered f32 outputs
    inter = 2 * tm * (h + e + h) * 4          # in-kernel intermediates (headroom)
    return weights + biases + x_io + out_io + inter + (4 << 20)


def autoencoder_forward_fused(params, x, *, compute_dtype=jnp.bfloat16, tm=None):
    (w_e1, b_e1), (w_e3, b_e3), (w_d1, b_d1), (w_d3, b_d3) = params
    M, d_in = x.shape
    h = w_e1.shape[1]
    e = w_e3.shape[1]
    assert w_e1.shape == (d_in, h) and w_e3.shape == (h, e)
    assert w_d1.shape == (e, h) and w_d3.shape == (h, d_in)
    assert b_e1.shape == (h,) and b_e3.shape == (e,)
    assert b_d1.shape == (h,) and b_d3.shape == (d_in,)

    cd = compute_dtype
    pack = _sublane_pack(cd)
    if tm is None:
        tm = min(256, _round_up(M, pack))
    mp = _round_up(M, tm)
    xp = x if mp == M else jnp.pad(x, ((0, mp - M), (0, 0)))
    xp = xp.astype(cd)

    need = _fused_vmem_bytes(tm, d_in, h, e, cd, _weight_bufs())
    vmem_limit = int(min(max(need, 32 << 20), _vmem_budget_bytes()))

    rowmap = lambda i: (i, 0)

    enc, dec = pl.pallas_call(
        _fused_ae_kernel,
        out_shape=(
            jax.ShapeDtypeStruct((mp, e), jnp.float32),
            jax.ShapeDtypeStruct((mp, d_in), jnp.float32),
        ),
        grid_spec=pltpu.PrefetchScalarGridSpec(
            num_scalar_prefetch=0,
            grid=(mp // tm,),
            in_specs=[
                pl.BlockSpec((tm, d_in), rowmap),
                _const_spec((d_in, h)), _const_spec((1, h)),
                _const_spec((h, e)), _const_spec((1, e)),
                _const_spec((e, h)), _const_spec((1, h)),
                _const_spec((h, d_in)), _const_spec((1, d_in)),
            ],
            out_specs=[
                pl.BlockSpec((tm, e), rowmap),
                pl.BlockSpec((tm, d_in), rowmap),
            ],
        ),
        compiler_params=pltpu.CompilerParams(
            dimension_semantics=("parallel",),   # batch tiles shard across TCs on v7x
            vmem_limit_bytes=vmem_limit,
        ),
    )(xp, w_e1.astype(cd), _brow(b_e1), w_e3.astype(cd), _brow(b_e3),
      w_d1.astype(cd), _brow(b_d1), w_d3.astype(cd), _brow(b_d3))
    return enc[:M], dec[:M]


# ---------------------------------------------------------------------------
# Per-layer streaming fallback pieces
# ---------------------------------------------------------------------------
def _linear_kernel(x_ref, w_ref, b_ref, o_ref, acc_ref, *, apply_relu):
    """y = relu?(x @ w + b) with K-reduction on the innermost grid axis.
    Accumulates in f32 VMEM scratch; bias seeds the accumulator; ReLU + dtype
    cast happen once on the last k step (lane-dense store in out dtype)."""
    k = pl.program_id(2)

    @pl.when(k == 0)
    def _():
        acc_ref[...] = jnp.broadcast_to(b_ref[...], acc_ref.shape)

    acc_ref[...] += jnp.dot(x_ref[...], w_ref[...],
                            preferred_element_type=jnp.float32)

    @pl.when(k == pl.num_programs(2) - 1)
    def _():
        r = acc_ref[...]
        if apply_relu:
            r = jnp.maximum(r, 0.0)
        o_ref[...] = r.astype(o_ref.dtype)


def linear_pallas(x, w, b, *, apply_relu=False, compute_dtype=jnp.bfloat16,
                  out_dtype=jnp.float32, tm=256, tn=256, tk=512):
    """y = relu?(x @ w + b). tn=None / tk=None mean 'full padded dim'."""
    M, K = x.shape
    kw_, N = w.shape
    assert K == kw_ and b.shape == (N,)
    cd = compute_dtype
    pack = _sublane_pack(cd)

    n_full = _round_up(N, 128)
    k_full = _round_up(K, 128)
    tn = n_full if tn is None else min(tn, n_full)
    tk = k_full if tk is None else min(tk, k_full)
    tm = min(tm, _round_up(M, pack))
    mp, np_, kp = _round_up(M, tm), _round_up(N, tn), _round_up(K, tk)

    xp = x if (mp, kp) == (M, K) else jnp.pad(x, ((0, mp - M), (0, kp - K)))
    wp = w if (kp, np_) == (K, N) else jnp.pad(w, ((0, kp - K), (0, np_ - N)))
    bp = b if np_ == N else jnp.pad(b, (0, np_ - N))
    xp = xp.astype(cd)
    wp = wp.astype(cd)
    bp = bp.astype(jnp.float32).reshape(1, np_)

    in_b = jnp.dtype(cd).itemsize
    out_b = jnp.dtype(out_dtype).itemsize
    need = (2 * (tm * tk + tk * tn) * in_b    # double-buffered x / w tiles
            + 2 * tn * 4                      # bias
            + tm * tn * 4                     # f32 accumulator scratch
            + 2 * tm * tn * out_b             # double-buffered output tile
            + (4 << 20))
    vmem_limit = int(min(max(need, 16 << 20), _vmem_budget_bytes()))

    out = pl.pallas_call(
        functools.partial(_linear_kernel, apply_relu=apply_relu),
        out_shape=jax.ShapeDtypeStruct((mp, np_), out_dtype),
        grid_spec=pltpu.PrefetchScalarGridSpec(
            num_scalar_prefetch=0,
            grid=(mp // tm, np_ // tn, kp // tk),
            in_specs=[
                pl.BlockSpec((tm, tk), lambda i, j, k: (i, k)),
                pl.BlockSpec((tk, tn), lambda i, j, k: (k, j)),
                pl.BlockSpec((1, tn), lambda i, j, k: (0, j)),
            ],
            out_specs=pl.BlockSpec((tm, tn), lambda i, j, k: (i, j)),
            scratch_shapes=[pltpu.VMEM((tm, tn), jnp.float32)],
        ),
        compiler_params=pltpu.CompilerParams(
            dimension_semantics=("parallel", "parallel", "arbitrary"),
            vmem_limit_bytes=vmem_limit,
        ),
    )(xp, wp, bp)
    return out[:M, :N]


def _middle_kernel(h1_ref, we3_ref, be3_ref, wd1_ref, bd1_ref, enc_ref, h2_ref):
    """encoder_fc3 + decoder_fc1(+ReLU) fused; tiny weights stay VMEM-resident."""
    f32 = jnp.float32
    enc = jnp.dot(h1_ref[...], we3_ref[...], preferred_element_type=f32) + be3_ref[...]
    enc_ref[...] = enc.astype(enc_ref.dtype)
    h2 = jnp.dot(enc.astype(wd1_ref.dtype), wd1_ref[...], preferred_element_type=f32)
    h2 = jnp.maximum(h2 + bd1_ref[...], 0.0)
    h2_ref[...] = h2.astype(h2_ref.dtype)


def middle_fused(h1, p_e3, p_d1, *, compute_dtype=jnp.bfloat16, tm=None):
    (w_e3, b_e3), (w_d1, b_d1) = p_e3, p_d1
    M, h = h1.shape
    e = w_e3.shape[1]
    cd = compute_dtype
    pack = _sublane_pack(cd)
    if tm is None:
        tm = min(256, _round_up(M, pack))
    mp = _round_up(M, tm)
    h1p = h1 if mp == M else jnp.pad(h1, ((0, mp - M), (0, 0)))
    h1p = h1p.astype(cd)

    wb = jnp.dtype(cd).itemsize
    bufs = _weight_bufs()
    need = ((h * e + e * h) * wb * bufs + (e + h) * 4 * bufs
            + 2 * tm * h * wb + 2 * tm * (e * 4 + h * wb)
            + 2 * tm * (e + h) * 4 + (4 << 20))
    vmem_limit = int(min(max(need, 16 << 20), _vmem_budget_bytes()))

    rowmap = lambda i: (i, 0)
    enc, h2 = pl.pallas_call(
        _middle_kernel,
        out_shape=(jax.ShapeDtypeStruct((mp, e), jnp.float32),
                   jax.ShapeDtypeStruct((mp, h), cd)),
        grid_spec=pltpu.PrefetchScalarGridSpec(
            num_scalar_prefetch=0,
            grid=(mp // tm,),
            in_specs=[
                pl.BlockSpec((tm, h), rowmap),
                _const_spec((h, e)), _const_spec((1, e)),
                _const_spec((e, h)), _const_spec((1, h)),
            ],
            out_specs=[pl.BlockSpec((tm, e), rowmap),
                       pl.BlockSpec((tm, h), rowmap)],
        ),
        compiler_params=pltpu.CompilerParams(
            dimension_semantics=("parallel",),
            vmem_limit_bytes=vmem_limit,
        ),
    )(h1p, w_e3.astype(cd), _brow(b_e3), w_d1.astype(cd), _brow(b_d1))
    return enc[:M], h2[:M]


def _fc1_tiles(N, K):
    """Tiling for encoder_fc1 (huge K, N=hidden_dim2) in the streaming path."""
    n_full = _round_up(N, 128)
    if _vmem_physical_bytes() < (100 << 20):
        # v7x-like (64 MiB/TC): keep >= 2 N tiles so both TCs stream weights.
        tn = max(128, _round_up(n_full // 2, 128))
    else:
        # v5e/v6e: full N -> the (tm x K) activation tile is streamed exactly once.
        tn = n_full
    tk = min(2048, _round_up(K, 128))
    return tn, tk


# ---------------------------------------------------------------------------
# Top-level forward: fused plan when the weights fit VMEM, else streaming.
# ---------------------------------------------------------------------------
def autoencoder_forward(params, x, *, compute_dtype=jnp.bfloat16,
                        force_per_layer=False):
    (w_e1, b_e1), (w_e3, b_e3), (w_d1, b_d1), (w_d3, b_d3) = params
    M, d_in = x.shape
    h = w_e1.shape[1]
    e = w_e3.shape[1]
    cd = compute_dtype
    tm = min(256, _round_up(M, _sublane_pack(cd)))

    fits = _fused_vmem_bytes(tm, d_in, h, e, cd, _weight_bufs()) <= _vmem_budget_bytes()
    if fits and not force_per_layer:
        return autoencoder_forward_fused(params, x, compute_dtype=cd, tm=tm)

    # --- Streaming fallback (production path for input_dim ~ 35898) --------
    tn_fc1, tk_fc1 = _fc1_tiles(h, d_in)
    # encoder_fc1 + ReLU : stream the huge weight, write h1 in compute dtype.
    h1 = linear_pallas(x, w_e1, b_e1, apply_relu=True, compute_dtype=cd,
                       out_dtype=cd, tm=256, tn=tn_fc1, tk=tk_fc1)
    # encoder_fc3 + decoder_fc1(+ReLU) : tiny weights, fused + VMEM-resident.
    encoded, h2 = middle_fused(h1, (w_e3, b_e3), (w_d1, b_d1), compute_dtype=cd)
    # decoder_fc3 : huge N, full-K blocks so the activation tile never re-streams.
    decoded = linear_pallas(h2, w_d3, b_d3, compute_dtype=cd,
                            out_dtype=jnp.float32, tm=256, tn=512, tk=None)
    return encoded, decoded


# ---------------------------------------------------------------------------
# Reference + init
# ---------------------------------------------------------------------------
def autoencoder_forward_ref(params, x, compute_dtype=jnp.float32):
    """Pure-JAX reference matching the kernels' compute-dtype cast pattern."""
    (w_e1, b_e1), (w_e3, b_e3), (w_d1, b_d1), (w_d3, b_d3) = params
    f32 = jnp.float32
    c = lambda a: a.astype(compute_dtype).astype(f32)
    h1 = jnp.maximum(c(x) @ c(w_e1) + b_e1, 0.0)
    enc = c(h1) @ c(w_e3) + b_e3
    h2 = jnp.maximum(c(enc) @ c(w_d1) + b_d1, 0.0)
    dec = c(h2) @ c(w_d3) + b_d3
    return enc, dec


def init_linear_params(key, in_dim, out_dim, dtype=jnp.float32):
    """torch.nn.Linear default init: U(-1/sqrt(fan_in), 1/sqrt(fan_in))."""
    kw, kb = jax.random.split(key)
    bound = 1.0 / jnp.sqrt(jnp.asarray(in_dim, dtype))
    w = jax.random.uniform(kw, (in_dim, out_dim), dtype, -bound, bound)  # weight.T
    b = jax.random.uniform(kb, (out_dim,), dtype, -bound, bound)
    return w, b


if __name__ == "__main__":
    # Probe Buffered(1) support eagerly (outside any jit trace).
    _buffered1_supported()

    # Small, TPU-tile-friendly stand-ins for (NODELEN*2, 2048, 384):
    batch = 8
    input_dim = 512
    hidden_dim2 = 256
    embedding_dim = 128

    key = jax.random.PRNGKey(0)
    k_x, k1, k2, k3, k4 = jax.random.split(key, 5)
    params = (
        init_linear_params(k1, input_dim, hidden_dim2),       # encoder_fc1
        init_linear_params(k2, hidden_dim2, embedding_dim),   # encoder_fc3
        init_linear_params(k3, embedding_dim, hidden_dim2),   # decoder_fc1
        init_linear_params(k4, hidden_dim2, input_dim),       # decoder_fc3
    )
    x = jax.random.normal(k_x, (batch, input_dim), jnp.float32)

    # 1) Fused single-kernel forward, default bf16 compute (f32 MXU accumulate).
    fwd_bf16 = jax.jit(functools.partial(autoencoder_forward,
                                         compute_dtype=jnp.bfloat16))
    enc16, dec16 = jax.block_until_ready(fwd_bf16(params, x))
    enc_r16, dec_r16 = autoencoder_forward_ref(params, x, jnp.bfloat16)
    assert enc16.shape == (batch, embedding_dim)
    assert dec16.shape == (batch, input_dim)
    assert jnp.allclose(enc16, enc_r16, atol=2e-2, rtol=2e-2)
    assert jnp.allclose(dec16, dec_r16, atol=2e-2, rtol=2e-2)

    # 2) Fused forward with f32 compute.
    fwd_f32 = jax.jit(functools.partial(autoencoder_forward,
                                        compute_dtype=jnp.float32))
    enc, dec = jax.block_until_ready(fwd_f32(params, x))
    enc_ref, dec_ref = autoencoder_forward_ref(params, x, jnp.float32)
    assert jnp.allclose(enc, enc_ref, atol=2e-3, rtol=2e-3)
    assert jnp.allclose(dec, dec_ref, atol=2e-3, rtol=2e-3)

    # 3) Per-layer streaming path (used when weights exceed the VMEM budget).
    fwd_stream = jax.jit(functools.partial(autoencoder_forward,
                                           compute_dtype=jnp.bfloat16,
                                           force_per_layer=True))
    enc_s, dec_s = jax.block_until_ready(fwd_stream(params, x))
    assert jnp.allclose(enc_s, enc_r16, atol=2e-2, rtol=2e-2)
    assert jnp.allclose(dec_s, dec_r16, atol=2e-2, rtol=2e-2)

    # 4) Non-multiple-of-pack batch exercises the padding path.
    x_odd = x[:5]
    enc_o, dec_o = jax.block_until_ready(fwd_bf16(params, x_odd))
    assert enc_o.shape == (5, embedding_dim) and dec_o.shape == (5, input_dim)
    assert jnp.allclose(enc_o, enc_r16[:5], atol=2e-2, rtol=2e-2)
    assert jnp.allclose(dec_o, dec_r16[:5], atol=2e-2, rtol=2e-2)

    print("KERNEL_OK")
</pallas_src>

<mosaic_0001>
module attributes {stable_mosaic.version = 11 : i64} {
  func.func @_probe_kernel(%arg0: i32, %arg1: memref<8x128xf32, #tpu.memory_space<vmem>>, %arg2: memref<8x128xf32, #tpu.memory_space<vmem>>) attributes {dimension_semantics = [#tpu.dimension_semantics<arbitrary>], iteration_bounds = array<i64: 2>, scalar_prefetch = 0 : i64, scratch_operands = 0 : i64, tpu.core_type = #tpu.core_type<tc>, window_params = [{pipeline_mode = #tpu.pipeline_mode<synchronous>, transform_indices = @transform_0, window_bounds = array<i64: 8, 128>}, {transform_indices = @transform_1, window_bounds = array<i64: 8, 128>}]} {
    %c0 = arith.constant 0 : index
    %c0_0 = arith.constant 0 : index
    %0 = vector.load %arg1[%c0, %c0_0] : memref<8x128xf32, #tpu.memory_space<vmem>>, vector<8x128xf32>
    %cst = arith.constant 2.000000e+00 : f32
    %1 = vector.broadcast %cst : f32 to vector<8x128xf32>
    %2 = arith.mulf %0, %1 : vector<8x128xf32>
    %c0_1 = arith.constant 0 : index
    %c0_2 = arith.constant 0 : index
    %3 = vector.load %arg2[%c0_1, %c0_2] : memref<8x128xf32, #tpu.memory_space<vmem>>, vector<8x128xf32>
    tpu.vector_store %arg2[%c0_1, %c0_2], %2 {strides = array<i32>} : memref<8x128xf32, #tpu.memory_space<vmem>>, vector<8x128xf32>,
    return
  }
  func.func @transform_0(%arg0: i32) -> (i32, i32) {
    %c0_i32 = arith.constant 0 : i32
    %c0_i32_0 = arith.constant 0 : i32
    %c0_i32_1 = arith.constant 0 : i32
    return %c0_i32, %c0_i32_0 : i32, i32
  }
  func.func @transform_1(%arg0: i32) -> (i32, i32) {
    %c0_i32 = arith.constant 0 : i32
    %c0_i32_0 = arith.constant 0 : i32
    return %arg0, %c0_i32 : i32, i32
  }
}

module attributes {stable_mosaic.version = 11 : i64} {
  func.func @_fused_ae_kernel(%arg0: i32, %arg1: memref<16x512xbf16, #tpu.memory_space<vmem>>, %arg2: memref<512x256xbf16, #tpu.memory_space<vmem>>, %arg3: memref<1x256xf32, #tpu.memory_space<vmem>>, %arg4: memref<256x128xbf16, #tpu.memory_space<vmem>>, %arg5: memref<1x128xf32, #tpu.memory_space<vmem>>, %arg6: memref<128x256xbf16, #tpu.memory_space<vmem>>, %arg7: memref<1x256xf32, #tpu.memory_space<vmem>>, %arg8: memref<256x512xbf16, #tpu.memory_space<vmem>>, %arg9: memref<1x512xf32, #tpu.memory_space<vmem>>, %arg10: memref<16x128xf32, #tpu.memory_space<vmem>>, %arg11: memref<16x512xf32, #tpu.memory_space<vmem>>) attributes {dimension_semantics = [#tpu.dimension_semantics<parallel>], iteration_bounds = array<i64: 1>, scalar_prefetch = 0 : i64, scratch_operands = 0 : i64, tpu.core_type = #tpu.core_type<tc>, window_params = [{transform_indices = @transform_0, window_bounds = array<i64: 16, 512>}, {pipeline_mode = #tpu.pipeline_mode<synchronous>, transform_indices = @transform_1, window_bounds = array<i64: 512, 256>}, {pipeline_mode = #tpu.pipeline_mode<synchronous>, transform_indices = @transform_2, window_bounds = array<i64: 1, 256>}, {pipeline_mode = #tpu.pipeline_mode<synchronous>, transform_indices = @transform_3, window_bounds = array<i64: 256, 128>}, {pipeline_mode = #tpu.pipeline_mode<synchronous>, transform_indices = @transform_4, window_bounds = array<i64: 1, 128>}, {pipeline_mode = #tpu.pipeline_mode<synchronous>, transform_indices = @transform_5, window_bounds = array<i64: 128, 256>}, {pipeline_mode = #tpu.pipeline_mode<synchronous>, transform_indices = @transform_6, window_bounds = array<i64: 1, 256>}, {pipeline_mode = #tpu.pipeline_mode<synchronous>, transform_indices = @transform_7, window_bounds = array<i64: 256, 512>}, {pipeline_mode = #tpu.pipeline_mode<synchronous>, transform_indices = @transform_8, window_bounds = array<i64: 1, 512>}, {transform_indices = @transform_9, window_bounds = array<i64: 16, 128>}, {transform_indices = @transform_10, window_bounds = array<i64: 16, 512>}]} {
    %c0 = arith.constant 0 : index
    %c0_0 = arith.constant 0 : index
    %0 = vector.load %arg1[%c0, %c0_0] : memref<16x512xbf16, #tpu.memory_space<vmem>>, vector<16x512xbf16>
    %c0_1 = arith.constant 0 : index
    %c0_2 = arith.constant 0 : index
    %1 = vector.load %arg2[%c0_1, %c0_2] : memref<512x256xbf16, #tpu.memory_space<vmem>>, vector<512x256xbf16>
    %cst = arith.constant dense<0.000000e+00> : vector<16x256xf32>
    %2 = tpu.matmul %0, %1, %cst {dimension_numbers = #tpu.dot_dimension_numbers<[1], [0], [0], [1], [0, 0, 1, 1], [], []>} : vector<16x512xbf16>, vector<512x256xbf16>, vector<16x256xf32> -> vector<16x256xf32>
    %c0_3 = arith.constant 0 : index
    %c0_4 = arith.constant 0 : index
    %3 = vector.load %arg3[%c0_3, %c0_4] : memref<1x256xf32, #tpu.memory_space<vmem>>, vector<1x256xf32>
    %4 = vector.broadcast %3 : vector<1x256xf32> to vector<16x256xf32>
    %5 = arith.addf %2, %4 : vector<16x256xf32>
    %cst_5 = arith.constant 0.000000e+00 : f32
    %6 = vector.broadcast %cst_5 : f32 to vector<16x256xf32>
    %7 = arith.maximumf %5, %6 : vector<16x256xf32>
    %8 = arith.truncf %7 : vector<16x256xf32> to vector<16x256xbf16>
    %c0_6 = arith.constant 0 : index
    %c0_7 = arith.constant 0 : index
    %9 = vector.load %arg4[%c0_6, %c0_7] : memref<256x128xbf16, #tpu.memory_space<vmem>>, vector<256x128xbf16>
    %cst_8 = arith.constant dense<0.000000e+00> : vector<16x128xf32>
    %10 = tpu.matmul %8, %9, %cst_8 {dimension_numbers = #tpu.dot_dimension_numbers<[1], [0], [0], [1], [0, 0, 1, 1], [], []>} : vector<16x256xbf16>, vector<256x128xbf16>, vector<16x128xf32> -> vector<16x128xf32>
    %c0_9 = arith.constant 0 : index
    %c0_10 = arith.constant 0 : index
    %11 = vector.load %arg5[%c0_9, %c0_10] : memref<1x128xf32, #tpu.memory_space<vmem>>, vector<1x128xf32>
    %12 = vector.broadcast %11 : vector<1x128xf32> to vector<16x128xf32>
    %13 = arith.addf %10, %12 : vector<16x128xf32>
    %c0_11 = arith.constant 0 : index
    %c0_12 = arith.constant 0 : index
    %14 = vector.load %arg10[%c0_11, %c0_12] : memref<16x128xf32, #tpu.memory_space<vmem>>, vector<16x128xf32>
    tpu.vector_store %arg10[%c0_11, %c0_12], %13 {strides = array<i32>} : memref<16x128xf32, #tpu.memory_space<vmem>>, vector<16x128xf32>,
    %15 = arith.truncf %13 : vector<16x128xf32> to vector<16x128xbf16>
    %c0_13 = arith.constant 0 : index
    %c0_14 = arith.constant 0 : index
    %16 = vector.load %arg6[%c0_13, %c0_14] : memref<128x256xbf16, #tpu.memory_space<vmem>>, vector<128x256xbf16>
    %cst_15 = arith.constant dense<0.000000e+00> : vector<16x256xf32>
    %17 = tpu.matmul %15, %16, %cst_15 {dimension_numbers = #tpu.dot_dimension_numbers<[1], [0], [0], [1], [0, 0, 1, 1], [], []>} : vector<16x128xbf16>, vector<128x256xbf16>, vector<16x256xf32> -> vector<16x256xf32>
    %c0_16 = arith.constant 0 : index
    %c0_17 = arith.constant 0 : index
    %18 = vector.load %arg7[%c0_16, %c0_17] : memref<1x256xf32, #tpu.memory_space<vmem>>, vector<1x256xf32>
    %19 = vector.broadcast %18 : vector<1x256xf32> to vector<16x256xf32>
    %20 = arith.addf %17, %19 : vector<16x256xf32>
    %cst_18 = arith.constant 0.000000e+00 : f32
    %21 = vector.broadcast %cst_18 : f32 to vector<16x256xf32>
    %22 = arith.maximumf %20, %21 : vector<16x256xf32>
    %23 = arith.truncf %22 : vector<16x256xf32> to vector<16x256xbf16>
    %c0_19 = arith.constant 0 : index
    %c0_20 = arith.constant 0 : index
    %24 = vector.load %arg8[%c0_19, %c0_20] : memref<256x512xbf16, #tpu.memory_space<vmem>>, vector<256x512xbf16>
    %cst_21 = arith.constant dense<0.000000e+00> : vector<16x512xf32>
    %25 = tpu.matmul %23, %24, %cst_21 {dimension_numbers = #tpu.dot_dimension_numbers<[1], [0], [0], [1], [0, 0, 1, 1], [], []>} : vector<16x256xbf16>, vector<256x512xbf16>, vector<16x512xf32> -> vector<16x512xf32>
    %c0_22 = arith.constant 0 : index
    %c0_23 = arith.constant 0 : index
    %26 = vector.load %arg9[%c0_22, %c0_23] : memref<1x512xf32, #tpu.memory_space<vmem>>, vector<1x512xf32>
    %27 = vector.broadcast %26 : vector<1x512xf32> to vector<16x512xf32>
    %28 = arith.addf %25, %27 : vector<16x512xf32>
    %c0_24 = arith.constant 0 : index
    %c0_25 = arith.constant 0 : index
    %29 = vector.load %arg11[%c0_24, %c0_25] : memref<16x512xf32, #tpu.memory_space<vmem>>, vector<16x512xf32>
    tpu.vector_store %arg11[%c0_24, %c0_25], %28 {strides = array<i32>} : memref<16x512xf32, #tpu.memory_space<vmem>>, vector<16x512xf32>,
    return
  }
  func.func @transform_0(%arg0: i32) -> (i32, i32) {
    %c0_i32 = arith.constant 0 : i32
    %c0_i32_0 = arith.constant 0 : i32
    return %arg0, %c0_i32 : i32, i32
  }
  func.func @transform_1(%arg0: i32) -> (i32, i32) {
    %c0_i32 = arith.constant 0 : i32
    %c0_i32_0 = arith.constant 0 : i32
    %c0_i32_1 = arith.constant 0 : i32
    return %c0_i32, %c0_i32_0 : i32, i32
  }
  func.func @transform_2(%arg0: i32) -> (i32, i32) {
    %c0_i32 = arith.constant 0 : i32
    %c0_i32_0 = arith.constant 0 : i32
    %c0_i32_1 = arith.constant 0 : i32
    return %c0_i32, %c0_i32_0 : i32, i32
  }
  func.func @transform_3(%arg0: i32) -> (i32, i32) {
    %c0_i32 = arith.constant 0 : i32
    %c0_i32_0 = arith.constant 0 : i32
    %c0_i32_1 = arith.constant 0 : i32
    return %c0_i32, %c0_i32_0 : i32, i32
  }
  func.func @transform_4(%arg0: i32) -> (i32, i32) {
    %c0_i32 = arith.constant 0 : i32
    %c0_i32_0 = arith.constant 0 : i32
    %c0_i32_1 = arith.constant 0 : i32
    return %c0_i32, %c0_i32_0 : i32, i32
  }
  func.func @transform_5(%arg0: i32) -> (i32, i32) {
    %c0_i32 = arith.constant 0 : i32
    %c0_i32_0 = arith.constant 0 : i32
    %c0_i32_1 = arith.constant 0 : i32
    return %c0_i32, %c0_i32_0 : i32, i32
  }
  func.func @transform_6(%arg0: i32) -> (i32, i32) {
    %c0_i32 = arith.constant 0 : i32
    %c0_i32_0 = arith.constant 0 : i32
    %c0_i32_1 = arith.constant 0 : i32
    return %c0_i32, %c0_i32_0 : i32, i32
  }
  func.func @transform_7(%arg0: i32) -> (i32, i32) {
    %c0_i32 = arith.constant 0 : i32
    %c0_i32_0 = arith.constant 0 : i32
    %c0_i32_1 = arith.constant 0 : i32
    return %c0_i32, %c0_i32_0 : i32, i32
  }
  func.func @transform_8(%arg0: i32) -> (i32, i32) {
    %c0_i32 = arith.constant 0 : i32
    %c0_i32_0 = arith.constant 0 : i32
    %c0_i32_1 = arith.constant 0 : i32
    return %c0_i32, %c0_i32_0 : i32, i32
  }
  func.func @transform_9(%arg0: i32) -> (i32, i32) {
    %c0_i32 = arith.constant 0 : i32
    %c0_i32_0 = arith.constant 0 : i32
    return %arg0, %c0_i32 : i32, i32
  }
  func.func @transform_10(%arg0: i32) -> (i32, i32) {
    %c0_i32 = arith.constant 0 : i32
    %c0_i32_0 = arith.constant 0 : i32
    return %arg0, %c0_i32 : i32, i32
  }
}

</mosaic_0001>

<llo_original>
// kernel: tpu_custom_call.1
$region0: #{tpu_custom_call.1}
  #allocation0 [shape = 'u32[]', space=smem, size = 0x4, offset = 0x4, fixed_abs, tag = 'smem constant byte address 0x4 - core index']
  #allocation1 [shape = 'u32[144,128]{1,0:T(1,128)}', space=vmem, size = 0x12000, scoped, tag = 'internal scratch']
  %s0 = inlined_call_operand.hbm [shape: f32[8,128], index: 0, kind: input, shape index: {}]
  %s1 = inlined_call_operand.hbm [shape: f32[16,128], index: 1, kind: output, shape index: {}]
  %s2 = sld [smem:[#allocation0]]
  $region41: #{tpu_custom_call.1} parent=0
    _
  %s4 = ssub.s32 1, %s2
  %s5 = scalar_select 0, %s4, %s2
  $region1: #{tpu_custom_call.1} parent=0
    #allocation2 [shape = 'u8[4096]{0}', space=vmem, size = 0x1000, scoped, tag = 'input window, operand 0, single buffered']
    #allocation3 [shape = 's32[2]{0}', space=sflag, size = 0x8, scoped, tag = 'scoped memory for tpu_custom_call.1']
    #allocation4 [shape = 's32[2]{0}', space=sflag, size = 0x8, scoped, tag = 'scoped memory for tpu_custom_call.1']
    #allocation5 [shape = 'u8[8192]{0}', space=vmem, size = 0x2000, scoped, tag = 'output window, operand 0']
    %6 = vsyncpa [#allocation3], 0
    %7 = vsyncpa [#allocation4], 0
    %s8 = scalar_lea.sflag [#allocation4], 1
    %9 = vsyncpa %s8, 0
    loop: start=0, step=1, limit=4
    $region2: #{tpu_custom_call.1} parent=1 // loop_pre_header
      _
    $region3: #{tpu_custom_call.1} parent=1 // loop_header
      %s11 = sphi 0, %s15
      %p12 = scmp.ge.s32.totalorder %s11, 4
      %s19 = sphi 0, %s19
      %s21 = sphi 0, %s19
      %s22 = sphi 0, %s21
      %s36 = sphi 0, %s22
      %s42 = sphi 0, %s44
      %s45 = sphi 0, %s42
      %s46 = sphi 0, %s45
      %s62 = sphi 0, %s46
    $region4: #{tpu_custom_call.1} parent=1 // loop_header_branch
      %14 = sbr.rel (%p12) target = $region8
    $region5: #{tpu_custom_call.1} parent=1 // loop_body
      %s16 = ssub.s32 %s11, 1
      %s17 = ssub.s32 %s11, 2
      %s18 = sadd.s32 %s11, 1
      %s20 = sadd.s32 %s19, 1
      %p23 = scmp.eq.s32.totalorder %s11, 1
      %p24 = scmp.ne.s32.totalorder %s19, %s21
      %p25 = scmp.eq.s32.totalorder %s11, 0
      %p26 = por %p24, %p25
      %p27 = scmp.ne.s32.totalorder %s19, %s21
      %p28 = scmp.eq.s32.totalorder %s16, 1
      %p29 = por %p27, %p28
      %p30 = scmp.ne.s32.totalorder %s21, %s22
      %p31 = scmp.eq.s32.totalorder %s16, 0
      %p32 = por %p30, %p31
      %p33 = scmp.ne.s32.totalorder %s21, %s22
      %p34 = scmp.eq.s32.totalorder %s17, 1
      %p35 = por %p33, %p34
      %p37 = scmp.ne.s32.totalorder %s22, %s36
      %p38 = scmp.eq.s32.totalorder %s17, 0
      %p39 = por %p37, %p38
      %s40 = ssub.s32 %s11, %s18
      %p41 = scmp.eq.s32.totalorder %s40, 0
      %s43 = sadd.s32 %s42, 1
      %s44 = scalar_select %p41, %s42, %s43
      %p47 = pneg %p41
      %p48 = scmp.eq.s32.totalorder %s11, 1
      %p49 = por %p47, %p48
      %p50 = scmp.ne.s32.totalorder %s42, %s45
      %p51 = scmp.eq.s32.totalorder %s11, 0
      %p52 = por %p50, %p51
      %p53 = scmp.ne.s32.totalorder %s42, %s45
      %p54 = scmp.eq.s32.totalorder %s16, 1
      %p55 = por %p53, %p54
      %p56 = scmp.ne.s32.totalorder %s45, %s46
      %p57 = scmp.eq.s32.totalorder %s16, 0
      %p58 = por %p56, %p57
      %p59 = scmp.ne.s32.totalorder %s45, %s46
      %p60 = scmp.eq.s32.totalorder %s17, 1
      %p61 = por %p59, %p60
      %p63 = scmp.ne.s32.totalorder %s46, %s62
      %p64 = scmp.eq.s32.totalorder %s17, 0
      %p65 = por %p63, %p64
      %p66 = scmp.le.s32.totalorder 1, %s11
      %p67 = scmp.lt.s32.totalorder %s11, 3
      %p68 = pnand %p66, %p67
      %p69 = pneg %p68
      // Predicated region
      $region9: #{tpu_custom_call.1} parent=5 // pred_check
        _
      $region10: #{tpu_custom_call.1} parent=5 // pred_check_branch
        %71 = sbr.rel (%p68) target = $region12
      $region11: #{tpu_custom_call.1} parent=5 // pred_region
        %s72 = ssub.s32 %s11, 1
        // Predicated region
        $region13: #{tpu_custom_call.1} parent=11 // pred_check
          %p73 = pneg %p32
        $region14: #{tpu_custom_call.1} parent=11 // pred_check_branch
          %75 = sbr.rel (%p73) target = $region16
        $region15: #{tpu_custom_call.1} parent=11 // pred_region
          %s77 = ssub.s32 128, 128
          %78 = vsyncadd [#allocation3], %s77
          %s80 = sshll.u32 [#allocation2], 4
          %s81 = int_to_ptr.vmem [resolvable:$true] %s80
          %83 = dma.hbm_to_vmem [thread:$0]  %s0, 128, %s81, [#allocation3]
        $region16: #{tpu_custom_call.1} parent=11 // pred_fallthru
          _
      $region12: #{tpu_custom_call.1} parent=5 // pred_fallthru
        _
      %p84 = scmp.lt.s32.totalorder %s11, 2
      // Predicated region
      $region17: #{tpu_custom_call.1} parent=5 // pred_check
        %p85 = pneg %p84
      $region18: #{tpu_custom_call.1} parent=5 // pred_check_branch
        %87 = sbr.rel (%p85) target = $region20
      $region19: #{tpu_custom_call.1} parent=5 // pred_region
        _
      $region20: #{tpu_custom_call.1} parent=5 // pred_fallthru
        _
      %p88 = scmp.le.s32.totalorder 1, %s11
      %p89 = scmp.lt.s32.totalorder %s11, 3
      %p90 = pnand %p88, %p89
      %p91 = pneg %p90
      // Predicated region
      $region21: #{tpu_custom_call.1} parent=5 // pred_check
        _
      $region22: #{tpu_custom_call.1} parent=5 // pred_check_branch
        %93 = sbr.rel (%p90) target = $region24
      $region23: #{tpu_custom_call.1} parent=5 // pred_region
        %s94 = ssub.s32 %s11, 1
        // Predicated region
        $region25: #{tpu_custom_call.1} parent=23 // pred_check
          %p95 = pneg %p32
        $region26: #{tpu_custom_call.1} parent=23 // pred_check_branch
          %97 = sbr.rel (%p95) target = $region28
        $region27: #{tpu_custom_call.1} parent=23 // pred_region
          %98 = dma.done [#allocation3], 128
        $region28: #{tpu_custom_call.1} parent=23 // pred_fallthru
          _
        %p99 = pneg %p32
        %p100 = pneg %p29
        %p101 = pneg %p58
        %p102 = pneg %p55
        %s103 = sand.u32 %s45, 1
        %s104 = scalar_lea.sflag [#allocation4], %s103
        %s105 = sand.u32 %s45, 1
        %s106 = smul.addr %s105, 8
        %s107 = scalar_lea.vmem [#allocation5], %s106
        %v108 = vld [vmem:[#allocation2] sm:$0xff]
        %v109 = vmul.f32 %v108, 2.0
        %110 = vst [vmem:[%s107] sm:$0xff] %v109
        %s111 = sand.u32 %s45, 1
        %s112 = scalar_lea.sflag [#allocation4], %s111
        %s113 = sand.u32 %s45, 1
        %s114 = smul.addr %s113, 8
        %s115 = scalar_lea.vmem [#allocation5], %s114
        // Predicated region
        $region29: #{tpu_custom_call.1} parent=23 // pred_check
          %p116 = pneg %p55
        $region30: #{tpu_custom_call.1} parent=23 // pred_check_branch
          %118 = sbr.rel (%p116) target = $region32
        $region31: #{tpu_custom_call.1} parent=23 // pred_region
          %s120 = ssub.s32 128, 128
          %121 = vsyncadd %s112, %s120
          %s122 = smul.addr %s16, 128
          %s123 = scalar_lea.hbm %s1, %s122
          %s125 = sshll.u32 %s115, 4
          %s126 = int_to_ptr.vmem [resolvable:$true] %s125
          %128 = dma.vmem_to_hbm [thread:$0]  %s126, 128, %s123, %s112
        $region32: #{tpu_custom_call.1} parent=23 // pred_fallthru
          _
      $region24: #{tpu_custom_call.1} parent=5 // pred_fallthru
        _
      %p129 = scmp.le.s32.totalorder 2, %s11
      // Predicated region
      $region33: #{tpu_custom_call.1} parent=5 // pred_check
        %p130 = pneg %p129
      $region34: #{tpu_custom_call.1} parent=5 // pred_check_branch
        %132 = sbr.rel (%p130) target = $region36
      $region35: #{tpu_custom_call.1} parent=5 // pred_region
        %s133 = ssub.s32 %s11, 2
        // Predicated region
        $region37: #{tpu_custom_call.1} parent=35 // pred_check
          %p134 = pneg %p61
        $region38: #{tpu_custom_call.1} parent=35 // pred_check_branch
          %136 = sbr.rel (%p134) target = $region40
        $region39: #{tpu_custom_call.1} parent=35 // pred_region
          %s137 = sand.u32 %s46, 1
          %s138 = scalar_lea.sflag [#allocation4], %s137
          %s139 = sand.u32 %s46, 1
          %s140 = smul.addr %s139, 8
          %s141 = scalar_lea.vmem [#allocation5], %s140
          %142 = dma.done %s138, 128
        $region40: #{tpu_custom_call.1} parent=35 // pred_fallthru
          _
      $region36: #{tpu_custom_call.1} parent=5 // pred_fallthru
        _
    $region6: #{tpu_custom_call.1} parent=1 // loop_footer
      %s15 = sadd.s32 1, %s11
    $region7: #{tpu_custom_call.1} parent=1 // loop_footer_branch
      %10 = sbr.rel target = $region3
    $region8: #{tpu_custom_call.1} parent=1 // loop_exit
      _
    %143 = vsyncpa [#allocation3], 1
    %s144 = scalar_lea.sflag [#allocation3], 1
    %145 = vsyncpa %s144, 1
    %146 = vsyncpa [#allocation4], 1
    %s147 = scalar_lea.sflag [#allocation4], 1
    %148 = vsyncpa %s147, 1

// kernel: autoencoder_forward.1
$region0: #{autoencoder_forward.1}
  #allocation0 [shape = 'u32[]', space=smem, size = 0x4, offset = 0x4, fixed_abs, tag = 'smem constant byte address 0x4 - core index']
  #allocation1 [shape = 'u32[144,128]{1,0:T(1,128)}', space=vmem, size = 0x12000, scoped, tag = 'internal scratch']
  %s0 = inlined_call_operand.vmem [shape: bf16[16,512], index: 0, kind: input, shape index: {}]
  %s1 = inlined_call_operand.vmem [shape: bf16[512,256], index: 1, kind: input, shape index: {}]
  %s2 = inlined_call_operand.vmem [shape: f32[1,256], index: 2, kind: input, shape index: {}]
  %s3 = inlined_call_operand.vmem [shape: bf16[256,128], index: 3, kind: input, shape index: {}]
  %s4 = inlined_call_operand.vmem [shape: f32[1,128], index: 4, kind: input, shape index: {}]
  %s5 = inlined_call_operand.vmem [shape: bf16[128,256], index: 5, kind: input, shape index: {}]
  %s6 = inlined_call_operand.vmem [shape: f32[1,256], index: 6, kind: input, shape index: {}]
  %s7 = inlined_call_operand.vmem [shape: bf16[256,512], index: 7, kind: input, shape index: {}]
  %s8 = inlined_call_operand.vmem [shape: f32[1,512], index: 8, kind: input, shape index: {}]
  %s9 = inlined_call_operand.vmem [shape: f32[16,128], index: 9, kind: output, shape index: {0}]
  %s10 = inlined_call_operand.vmem [shape: f32[16,512], index: 10, kind: output, shape index: {1}]
  %11 = xla_tuple %s9, %s10
  %s12 = sld [smem:[#allocation0]]
  $region54: #{autoencoder_forward.1} parent=0
    _
  %s14 = ssub.s32 1, %s12
  %s15 = scalar_select 0, %s14, %s12
  // Predicated region
  $region2: #{autoencoder_forward.1} parent=0 // pred_check
    _
  $region3: #{autoencoder_forward.1} parent=0 // pred_check_branch
    %17 = sbr.rel (0) target = $region5
  $region4: #{autoencoder_forward.1} parent=0 // pred_region
    _
  $region5: #{autoencoder_forward.1} parent=0 // pred_fallthru
    _
  // Predicated region
  $region6: #{autoencoder_forward.1} parent=0 // pred_check
    _
  $region7: #{autoencoder_forward.1} parent=0 // pred_check_branch
    %19 = sbr.rel (0) target = $region9
  $region8: #{autoencoder_forward.1} parent=0 // pred_region
    _
  $region9: #{autoencoder_forward.1} parent=0 // pred_fallthru
    _
  // Predicated region
  $region10: #{autoencoder_forward.1} parent=0 // pred_check
    _
  $region11: #{autoencoder_forward.1} parent=0 // pred_check_branch
    %21 = sbr.rel (0) target = $region13
  $region12: #{autoencoder_forward.1} parent=0 // pred_region
    _
  $region13: #{autoencoder_forward.1} parent=0 // pred_fallthru
    _
  // Predicated region
  $region14: #{autoencoder_forward.1} parent=0 // pred_check
    _
  $region15: #{autoencoder_forward.1} parent=0 // pred_check_branch
    %23 = sbr.rel (0) target = $region17
  $region16: #{autoencoder_forward.1} parent=0 // pred_region
    _
  $region17: #{autoencoder_forward.1} parent=0 // pred_fallthru
    _
  // Predicated region
  $region18: #{autoencoder_forward.1} parent=0 // pred_check
    _
  $region19: #{autoencoder_forward.1} parent=0 // pred_check_branch
    %25 = sbr.rel (0) target = $region21
  $region20: #{autoencoder_forward.1} parent=0 // pred_region
    _
  $region21: #{autoencoder_forward.1} parent=0 // pred_fallthru
    _
  // Predicated region
  $region22: #{autoencoder_forward.1} parent=0 // pred_check
    _
  $region23: #{autoencoder_forward.1} parent=0 // pred_check_branch
    %27 = sbr.rel (0) target = $region25
  $region24: #{autoencoder_forward.1} parent=0 // pred_region
    _
  $region25: #{autoencoder_forward.1} parent=0 // pred_fallthru
    _
  // Predicated region
  $region26: #{autoencoder_forward.1} parent=0 // pred_check
    _
  $region27: #{autoencoder_forward.1} parent=0 // pred_check_branch
    %29 = sbr.rel (0) target = $region29
  $region28: #{autoencoder_forward.1} parent=0 // pred_region
    _
  $region29: #{autoencoder_forward.1} parent=0 // pred_fallthru
    _
  // Predicated region
  $region30: #{autoencoder_forward.1} parent=0 // pred_check
    _
  $region31: #{autoencoder_forward.1} parent=0 // pred_check_branch
    %31 = sbr.rel (0) target = $region33
  $region32: #{autoencoder_forward.1} parent=0 // pred_region
    _
  $region33: #{autoencoder_forward.1} parent=0 // pred_fallthru
    _
  // Predicated region
  $region34: #{autoencoder_forward.1} parent=0 // pred_check
    _
  $region35: #{autoencoder_forward.1} parent=0 // pred_check_branch
    %33 = sbr.rel (0) target = $region37
  $region36: #{autoencoder_forward.1} parent=0 // pred_region
    _
  $region37: #{autoencoder_forward.1} parent=0 // pred_fallthru
    _
  %v35 = vld [vmem:[%s0] sm:$0xff]
  %v36 = vld [vmem:[%s0 + $0x8] sm:$0xff]
  %v37 = vld [vmem:[%s0 + $0x10] sm:$0xff]
  %v38 = vld [vmem:[%s0 + $0x18] sm:$0xff]
  %v39 = vld [vmem:[%s1] sm:$0xff]
  %v40 = vld [vmem:[%s1 + $0x8] sm:$0xff]
  %v41 = vld [vmem:[%s1 + $0x10] sm:$0xff]
  %v42 = vld [vmem:[%s1 + $0x18] sm:$0xff]
  %v43 = vld [vmem:[%s1 + $0x20] sm:$0xff]
  %v44 = vld [vmem:[%s1 + $0x28] sm:$0xff]
  %v45 = vld [vmem:[%s1 + $0x30] sm:$0xff]
  %v46 = vld [vmem:[%s1 + $0x38] sm:$0xff]
  %v47 = vld [vmem:[%s1 + $0x40] sm:$0xff]
  %v48 = vld [vmem:[%s1 + $0x48] sm:$0xff]
  %v49 = vld [vmem:[%s1 + $0x50] sm:$0xff]
  %v50 = vld [vmem:[%s1 + $0x58] sm:$0xff]
  %v51 = vld [vmem:[%s1 + $0x60] sm:$0xff]
  %v52 = vld [vmem:[%s1 + $0x68] sm:$0xff]
  %v53 = vld [vmem:[%s1 + $0x70] sm:$0xff]
  %v54 = vld [vmem:[%s1 + $0x78] sm:$0xff]
  %v55 = vld [vmem:[%s1 + $0x80] sm:$0xff]
  %v56 = vld [vmem:[%s1 + $0x88] sm:$0xff]
  %v57 = vld [vmem:[%s1 + $0x90] sm:$0xff]
  %v58 = vld [vmem:[%s1 + $0x98] sm:$0xff]
  %v59 = vld [vmem:[%s1 + $0xa0] sm:$0xff]
  %v60 = vld [vmem:[%s1 + $0xa8] sm:$0xff]
  %v61 = vld [vmem:[%s1 + $0xb0] sm:$0xff]
  %v62 = vld [vmem:[%s1 + $0xb8] sm:$0xff]
  %v63 = vld [vmem:[%s1 + $0xc0] sm:$0xff]
  %v64 = vld [vmem:[%s1 + $0xc8] sm:$0xff]
  %v65 = vld [vmem:[%s1 + $0xd0] sm:$0xff]
  %v66 = vld [vmem:[%s1 + $0xd8] sm:$0xff]
  %v67 = vld [vmem:[%s1 + $0xe0] sm:$0xff]
  %v68 = vld [vmem:[%s1 + $0xe8] sm:$0xff]
  %v69 = vld [vmem:[%s1 + $0xf0] sm:$0xff]
  %v70 = vld [vmem:[%s1 + $0xf8] sm:$0xff]
  %v71 = vld [vmem:[%s1 + $0x100] sm:$0xff]
  %v72 = vld [vmem:[%s1 + $0x108] sm:$0xff]
  %v73 = vld [vmem:[%s1 + $0x110] sm:$0xff]
  %v74 = vld [vmem:[%s1 + $0x118] sm:$0xff]
  %v75 = vld [vmem:[%s1 + $0x120] sm:$0xff]
  %v76 = vld [vmem:[%s1 + $0x128] sm:$0xff]
  %v77 = vld [vmem:[%s1 + $0x130] sm:$0xff]
  %v78 = vld [vmem:[%s1 + $0x138] sm:$0xff]
  %v79 = vld [vmem:[%s1 + $0x140] sm:$0xff]
  %v80 = vld [vmem:[%s1 + $0x148] sm:$0xff]
  %v81 = vld [vmem:[%s1 + $0x150] sm:$0xff]
  %v82 = vld [vmem:[%s1 + $0x158] sm:$0xff]
  %v83 = vld [vmem:[%s1 + $0x160] sm:$0xff]
  %v84 = vld [vmem:[%s1 + $0x168] sm:$0xff]
  %v85 = vld [vmem:[%s1 + $0x170] sm:$0xff]
  %v86 = vld [vmem:[%s1 + $0x178] sm:$0xff]
  %v87 = vld [vmem:[%s1 + $0x180] sm:$0xff]
  %v88 = vld [vmem:[%s1 + $0x188] sm:$0xff]
  %v89 = vld [vmem:[%s1 + $0x190] sm:$0xff]
  %v90 = vld [vmem:[%s1 + $0x198] sm:$0xff]
  %v91 = vld [vmem:[%s1 + $0x1a0] sm:$0xff]
  %v92 = vld [vmem:[%s1 + $0x1a8] sm:$0xff]
  %v93 = vld [vmem:[%s1 + $0x1b0] sm:$0xff]
  %v94 = vld [vmem:[%s1 + $0x1b8] sm:$0xff]
  %v95 = vld [vmem:[%s1 + $0x1c0] sm:$0xff]
  %v96 = vld [vmem:[%s1 + $0x1c8] sm:$0xff]
  %v97 = vld [vmem:[%s1 + $0x1d0] sm:$0xff]
  %v98 = vld [vmem:[%s1 + $0x1d8] sm:$0xff]
  %v99 = vld [vmem:[%s1 + $0x1e0] sm:$0xff]
  %v100 = vld [vmem:[%s1 + $0x1e8] sm:$0xff]
  %v101 = vld [vmem:[%s1 + $0x1f0] sm:$0xff]
  %v102 = vld [vmem:[%s1 + $0x1f8] sm:$0xff]
  %v103 = vld [vmem:[%s2] sm:$0x3]
  %v105 = vlaneseq
  %v106 = vshrl.u32 %v105, 7
  %v107 = vsub.s32 0, %v106
  %v108 = vrot.slane %v103, %v107
  %v109 = vlaneseq
  %v110 = vshrl.u32 %v109, 7
  %v111 = vsub.s32 1, %v110
  %v112 = vrot.slane %v103, %v111
  %v119 = vunpack.c.l.b16 %v35
  %v120 = vunpack.c.h.b16 %v35
  %v121 = vunpack.c.l.b16 %v36
  %v122 = vunpack.c.h.b16 %v36
  %v123 = vunpack.c.l.b16 %v37
  %v124 = vunpack.c.h.b16 %v37
  %v125 = vunpack.c.l.b16 %v38
  %v126 = vunpack.c.h.b16 %v38
  %v127 = vpack.c.b16 %v123, %v119
  %v128 = vpack.c.b16 %v124, %v120
  %v129 = vpack.c.b16 %v125, %v121
  %v130 = vpack.c.b16 %v126, %v122
  %v199 = vunpack.c.l.b16 %v39
  %v200 = vunpack.c.h.b16 %v39
  %v201 = vunpack.c.l.b16 %v40
  %v202 = vunpack.c.h.b16 %v40
  %v203 = vunpack.c.l.b16 %v41
  %v204 = vunpack.c.h.b16 %v41
  %v205 = vunpack.c.l.b16 %v42
  %v206 = vunpack.c.h.b16 %v42
  %v207 = vunpack.c.l.b16 %v43
  %v208 = vunpack.c.h.b16 %v43
  %v209 = vunpack.c.l.b16 %v44
  %v210 = vunpack.c.h.b16 %v44
  %v211 = vunpack.c.l.b16 %v45
  %v212 = vunpack.c.h.b16 %v45
  %v213 = vunpack.c.l.b16 %v46
  %v214 = vunpack.c.h.b16 %v46
  %v215 = vunpack.c.l.b16 %v47
  %v216 = vunpack.c.h.b16 %v47
  %v217 = vunpack.c.l.b16 %v48
  %v218 = vunpack.c.h.b16 %v48
  %v219 = vunpack.c.l.b16 %v49
  %v220 = vunpack.c.h.b16 %v49
  %v221 = vunpack.c.l.b16 %v50
  %v222 = vunpack.c.h.b16 %v50
  %v223 = vunpack.c.l.b16 %v51
  %v224 = vunpack.c.h.b16 %v51
  %v225 = vunpack.c.l.b16 %v52
  %v226 = vunpack.c.h.b16 %v52
  %v227 = vunpack.c.l.b16 %v53
  %v228 = vunpack.c.h.b16 %v53
  %v229 = vunpack.c.l.b16 %v54
  %v230 = vunpack.c.h.b16 %v54
  %v231 = vunpack.c.l.b16 %v55
  %v232 = vunpack.c.h.b16 %v55
  %v233 = vunpack.c.l.b16 %v56
  %v234 = vunpack.c.h.b16 %v56
  %v235 = vunpack.c.l.b16 %v57
  %v236 = vunpack.c.h.b16 %v57
  %v237 = vunpack.c.l.b16 %v58
  %v238 = vunpack.c.h.b16 %v58
  %v239 = vunpack.c.l.b16 %v59
  %v240 = vunpack.c.h.b16 %v59
  %v241 = vunpack.c.l.b16 %v60
  %v242 = vunpack.c.h.b16 %v60
  %v243 = vunpack.c.l.b16 %v61
  %v244 = vunpack.c.h.b16 %v61
  %v245 = vunpack.c.l.b16 %v62
  %v246 = vunpack.c.h.b16 %v62
  %v247 = vunpack.c.l.b16 %v63
  %v248 = vunpack.c.h.b16 %v63
  %v249 = vunpack.c.l.b16 %v64
  %v250 = vunpack.c.h.b16 %v64
  %v251 = vunpack.c.l.b16 %v65
  %v252 = vunpack.c.h.b16 %v65
  %v253 = vunpack.c.l.b16 %v66
  %v254 = vunpack.c.h.b16 %v66
  %v255 = vunpack.c.l.b16 %v67
  %v256 = vunpack.c.h.b16 %v67
  %v257 = vunpack.c.l.b16 %v68
  %v258 = vunpack.c.h.b16 %v68
  %v259 = vunpack.c.l.b16 %v69
  %v260 = vunpack.c.h.b16 %v69
  %v261 = vunpack.c.l.b16 %v70
  %v262 = vunpack.c.h.b16 %v70
  %v263 = vunpack.c.l.b16 %v71
  %v264 = vunpack.c.h.b16 %v71
  %v265 = vunpack.c.l.b16 %v72
  %v266 = vunpack.c.h.b16 %v72
  %v267 = vunpack.c.l.b16 %v73
  %v268 = vunpack.c.h.b16 %v73
  %v269 = vunpack.c.l.b16 %v74
  %v270 = vunpack.c.h.b16 %v74
  %v271 = vunpack.c.l.b16 %v75
  %v272 = vunpack.c.h.b16 %v75
  %v273 = vunpack.c.l.b16 %v76
  %v274 = vunpack.c.h.b16 %v76
  %v275 = vunpack.c.l.b16 %v77
  %v276 = vunpack.c.h.b16 %v77
  %v277 = vunpack.c.l.b16 %v78
  %v278 = vunpack.c.h.b16 %v78
  %v279 = vunpack.c.l.b16 %v79
  %v280 = vunpack.c.h.b16 %v79
  %v281 = vunpack.c.l.b16 %v80
  %v282 = vunpack.c.h.b16 %v80
  %v283 = vunpack.c.l.b16 %v81
  %v284 = vunpack.c.h.b16 %v81
  %v285 = vunpack.c.l.b16 %v82
  %v286 = vunpack.c.h.b16 %v82
  %v287 = vunpack.c.l.b16 %v83
  %v288 = vunpack.c.h.b16 %v83
  %v289 = vunpack.c.l.b16 %v84
  %v290 = vunpack.c.h.b16 %v84
  %v291 = vunpack.c.l.b16 %v85
  %v292 = vunpack.c.h.b16 %v85
  %v293 = vunpack.c.l.b16 %v86
  %v294 = vunpack.c.h.b16 %v86
  %v295 = vunpack.c.l.b16 %v87
  %v296 = vunpack.c.h.b16 %v87
  %v297 = vunpack.c.l.b16 %v88
  %v298 = vunpack.c.h.b16 %v88
  %v299 = vunpack.c.l.b16 %v89
  %v300 = vunpack.c.h.b16 %v89
  %v301 = vunpack.c.l.b16 %v90
  %v302 = vunpack.c.h.b16 %v90
  %v303 = vunpack.c.l.b16 %v91
  %v304 = vunpack.c.h.b16 %v91
  %v305 = vunpack.c.l.b16 %v92
  %v306 = vunpack.c.h.b16 %v92
  %v307 = vunpack.c.l.b16 %v93
  %v308 = vunpack.c.h.b16 %v93
  %v309 = vunpack.c.l.b16 %v94
  %v310 = vunpack.c.h.b16 %v94
  %v311 = vunpack.c.l.b16 %v95
  %v312 = vunpack.c.h.b16 %v95
  %v313 = vunpack.c.l.b16 %v96
  %v314 = vunpack.c.h.b16 %v96
  %v315 = vunpack.c.l.b16 %v97
  %v316 = vunpack.c.h.b16 %v97
  %v317 = vunpack.c.l.b16 %v98
  %v318 = vunpack.c.h.b16 %v98
  %v319 = vunpack.c.l.b16 %v99
  %v320 = vunpack.c.h.b16 %v99
  %v321 = vunpack.c.l.b16 %v100
  %v322 = vunpack.c.h.b16 %v100
  %v323 = vunpack.c.l.b16 %v101
  %v324 = vunpack.c.h.b16 %v101
  %v325 = vunpack.c.l.b16 %v102
  %v326 = vunpack.c.h.b16 %v102
  %v327 = vpack.c.b16 %v201, %v199
  %v328 = vpack.c.b16 %v202, %v200
  %v329 = vpack.c.b16 %v205, %v203
  %v330 = vpack.c.b16 %v206, %v204
  %v331 = vpack.c.b16 %v209, %v207
  %v332 = vpack.c.b16 %v210, %v208
  %v333 = vpack.c.b16 %v213, %v211
  %v334 = vpack.c.b16 %v214, %v212
  %v335 = vpack.c.b16 %v217, %v215
  %v336 = vpack.c.b16 %v218, %v216
  %v337 = vpack.c.b16 %v221, %v219
  %v338 = vpack.c.b16 %v222, %v220
  %v339 = vpack.c.b16 %v225, %v223
  %v340 = vpack.c.b16 %v226, %v224
  %v341 = vpack.c.b16 %v229, %v227
  %v342 = vpack.c.b16 %v230, %v228
  %v343 = vpack.c.b16 %v233, %v231
  %v344 = vpack.c.b16 %v234, %v232
  %v345 = vpack.c.b16 %v237, %v235
  %v346 = vpack.c.b16 %v238, %v236
  %v347 = vpack.c.b16 %v241, %v239
  %v348 = vpack.c.b16 %v242, %v240
  %v349 = vpack.c.b16 %v245, %v243
  %v350 = vpack.c.b16 %v246, %v244
  %v351 = vpack.c.b16 %v249, %v247
  %v352 = vpack.c.b16 %v250, %v248
  %v353 = vpack.c.b16 %v253, %v251
  %v354 = vpack.c.b16 %v254, %v252
  %v355 = vpack.c.b16 %v257, %v255
  %v356 = vpack.c.b16 %v258, %v256
  %v357 = vpack.c.b16 %v261, %v259
  %v358 = vpack.c.b16 %v262, %v260
  %v359 = vpack.c.b16 %v265, %v263
  %v360 = vpack.c.b16 %v266, %v264
  %v361 = vpack.c.b16 %v269, %v267
  %v362 = vpack.c.b16 %v270, %v268
  %v363 = vpack.c.b16 %v273, %v271
  %v364 = vpack.c.b16 %v274, %v272
  %v365 = vpack.c.b16 %v277, %v275
  %v366 = vpack.c.b16 %v278, %v276
  %v367 = vpack.c.b16 %v281, %v279
  %v368 = vpack.c.b16 %v282, %v280
  %v369 = vpack.c.b16 %v285, %v283
  %v370 = vpack.c.b16 %v286, %v284
  %v371 = vpack.c.b16 %v289, %v287
  %v372 = vpack.c.b16 %v290, %v288
  %v373 = vpack.c.b16 %v293, %v291
  %v374 = vpack.c.b16 %v294, %v292
  %v375 = vpack.c.b16 %v297, %v295
  %v376 = vpack.c.b16 %v298, %v296
  %v377 = vpack.c.b16 %v301, %v299
  %v378 = vpack.c.b16 %v302, %v300
  %v379 = vpack.c.b16 %v305, %v303
  %v380 = vpack.c.b16 %v306, %v304
  %v381 = vpack.c.b16 %v309, %v307
  %v382 = vpack.c.b16 %v310, %v308
  %v383 = vpack.c.b16 %v313, %v311
  %v384 = vpack.c.b16 %v314, %v312
  %v385 = vpack.c.b16 %v317, %v315
  %v386 = vpack.c.b16 %v318, %v316
  %v387 = vpack.c.b16 %v321, %v319
  %v388 = vpack.c.b16 %v322, %v320
  %v389 = vpack.c.b16 %v325, %v323
  %v390 = vpack.c.b16 %v326, %v324
  %455 = vmatprep.subr.bf16.mxu0 %v328
  %456 = vmatpush1.bf16.msra.mxu0 %v327
  %457 = vmatprep.subr.bf16.mxu0 %v330
  %458 = vmatpush1.bf16.msra.mxu0 %v329
  %459 = vmatprep.subr.bf16.mxu0 %v332
  %460 = vmatpush1.bf16.msra.mxu0 %v331
  %461 = vmatprep.subr.bf16.mxu0 %v334
  %462 = vmatpush1.bf16.msra.mxu0 %v333
  %463 = vmatprep.subr.bf16.mxu0 %v336
  %464 = vmatpush1.bf16.msra.mxu0 %v335
  %465 = vmatprep.subr.bf16.mxu0 %v338
  %466 = vmatpush1.bf16.msra.mxu0 %v337
  %467 = vmatprep.subr.bf16.mxu0 %v340
  %468 = vmatpush1.bf16.msra.mxu0 %v339
  %469 = vmatprep.subr.bf16.mxu0 %v342
  %470 = vmatpush1.bf16.msra.mxu0 %v341
  %471 = vmatprep.subr.bf16.mxu0 %v344
  %472 = vmatpush1.bf16.msra.mxu0 %v343
  %473 = vmatprep.subr.bf16.mxu0 %v346
  %474 = vmatpush1.bf16.msra.mxu0 %v345
  %475 = vmatprep.subr.bf16.mxu0 %v348
  %476 = vmatpush1.bf16.msra.mxu0 %v347
  %477 = vmatprep.subr.bf16.mxu0 %v350
  %478 = vmatpush1.bf16.msra.mxu0 %v349
  %479 = vmatprep.subr.bf16.mxu0 %v352
  %480 = vmatpush1.bf16.msra.mxu0 %v351
  %481 = vmatprep.subr.bf16.mxu0 %v354
  %482 = vmatpush1.bf16.msra.mxu0 %v353
  %483 = vmatprep.subr.bf16.mxu0 %v356
  %484 = vmatpush1.bf16.msra.mxu0 %v355
  %485 = vmatprep.subr.bf16.mxu0 %v358
  %486 = vmatpush1.bf16.msra.mxu0 %v357
  %487 = vmatprep.mubr.bf16.mxu0 %v128
  %488 = vmatmul.mubr.bf16.gmra.mrb[0].mxu0 %v127
  %v489 = vpop.f32.mrb[0].mxu0
  %v490 = vadd.f32 %v108, %v489
  %v491 = vpop.f32.mrb[0].mxu0
  %v492 = vadd.f32 %v112, %v491
  %v493 = vpop.f32.mrb[0].mxu0
  %v494 = vadd.f32 %v108, %v493
  %v495 = vpop.f32.mrb[0].mxu0
  %v496 = vadd.f32 %v112, %v495
  %497 = vdwg.mxu0
  %498 = vmatprep.subr.bf16.mxu0 %v360
  %499 = vmatpush1.bf16.msra.mxu0 %v359
  %500 = vmatprep.subr.bf16.mxu0 %v362
  %501 = vmatpush1.bf16.msra.mxu0 %v361
  %502 = vmatprep.subr.bf16.mxu0 %v364
  %503 = vmatpush1.bf16.msra.mxu0 %v363
  %504 = vmatprep.subr.bf16.mxu0 %v366
  %505 = vmatpush1.bf16.msra.mxu0 %v365
  %506 = vmatprep.subr.bf16.mxu0 %v368
  %507 = vmatpush1.bf16.msra.mxu0 %v367
  %508 = vmatprep.subr.bf16.mxu0 %v370
  %509 = vmatpush1.bf16.msra.mxu0 %v369
  %510 = vmatprep.subr.bf16.mxu0 %v372
  %511 = vmatpush1.bf16.msra.mxu0 %v371
  %512 = vmatprep.subr.bf16.mxu0 %v374
  %513 = vmatpush1.bf16.msra.mxu0 %v373
  %514 = vmatprep.subr.bf16.mxu0 %v376
  %515 = vmatpush1.bf16.msra.mxu0 %v375
  %516 = vmatprep.subr.bf16.mxu0 %v378
  %517 = vmatpush1.bf16.msra.mxu0 %v377
  %518 = vmatprep.subr.bf16.mxu0 %v380
  %519 = vmatpush1.bf16.msra.mxu0 %v379
  %520 = vmatprep.subr.bf16.mxu0 %v382
  %521 = vmatpush1.bf16.msra.mxu0 %v381
  %522 = vmatprep.subr.bf16.mxu0 %v384
  %523 = vmatpush1.bf16.msra.mxu0 %v383
  %524 = vmatprep.subr.bf16.mxu0 %v386
  %525 = vmatpush1.bf16.msra.mxu0 %v385
  %526 = vmatprep.subr.bf16.mxu0 %v388
  %527 = vmatpush1.bf16.msra.mxu0 %v387
  %528 = vmatprep.subr.bf16.mxu0 %v390
  %529 = vmatpush1.bf16.msra.mxu0 %v389
  %530 = vmatprep.mubr.bf16.mxu0 %v130
  %531 = vmatmul.mubr.bf16.gmra.mrb[0].mxu0 %v129
  %v532 = vpop.f32.mrb[0].mxu0
  %v533 = vadd.f32 %v490, %v532
  %v534 = vpop.f32.mrb[0].mxu0
  %v535 = vadd.f32 %v492, %v534
  %v536 = vpop.f32.mrb[0].mxu0
  %v537 = vadd.f32 %v494, %v536
  %v538 = vpop.f32.mrb[0].mxu0
  %v539 = vadd.f32 %v496, %v538
  %540 = vdwg.mxu0
  %v541 = vmax.f32 %v533, 0.0
  %v542 = vmax.f32 %v535, 0.0
  %v543 = vmax.f32 %v537, 0.0
  %v544 = vmax.f32 %v539, 0.0
  %v545 = vpack.c.bf16 %v543, %v541
  %v546 = vpack.c.bf16 %v544, %v542
  %v547 = vld [vmem:[%s3] sm:$0xf]
  %v548 = vld [vmem:[%s3 + $0x4] sm:$0xf]
  %v549 = vld [vmem:[%s3 + $0x8] sm:$0xf]
  %v550 = vld [vmem:[%s3 + $0xc] sm:$0xf]
  %v551 = vld [vmem:[%s3 + $0x10] sm:$0xf]
  %v552 = vld [vmem:[%s3 + $0x14] sm:$0xf]
  %v553 = vld [vmem:[%s3 + $0x18] sm:$0xf]
  %v554 = vld [vmem:[%s3 + $0x1c] sm:$0xf]
  %v555 = vld [vmem:[%s3 + $0x20] sm:$0xf]
  %v556 = vld [vmem:[%s3 + $0x24] sm:$0xf]
  %v557 = vld [vmem:[%s3 + $0x28] sm:$0xf]
  %v558 = vld [vmem:[%s3 + $0x2c] sm:$0xf]
  %v559 = vld [vmem:[%s3 + $0x30] sm:$0xf]
  %v560 = vld [vmem:[%s3 + $0x34] sm:$0xf]
  %v561 = vld [vmem:[%s3 + $0x38] sm:$0xf]
  %v562 = vld [vmem:[%s3 + $0x3c] sm:$0xf]
  %v563 = vld [vmem:[%s3 + $0x40] sm:$0xf]
  %v564 = vld [vmem:[%s3 + $0x44] sm:$0xf]
  %v565 = vld [vmem:[%s3 + $0x48] sm:$0xf]
  %v566 = vld [vmem:[%s3 + $0x4c] sm:$0xf]
  %v567 = vld [vmem:[%s3 + $0x50] sm:$0xf]
  %v568 = vld [vmem:[%s3 + $0x54] sm:$0xf]
  %v569 = vld [vmem:[%s3 + $0x58] sm:$0xf]
  %v570 = vld [vmem:[%s3 + $0x5c] sm:$0xf]
  %v571 = vld [vmem:[%s3 + $0x60] sm:$0xf]
  %v572 = vld [vmem:[%s3 + $0x64] sm:$0xf]
  %v573 = vld [vmem:[%s3 + $0x68] sm:$0xf]
  %v574 = vld [vmem:[%s3 + $0x6c] sm:$0xf]
  %v575 = vld [vmem:[%s3 + $0x70] sm:$0xf]
  %v576 = vld [vmem:[%s3 + $0x74] sm:$0xf]
  %v577 = vld [vmem:[%s3 + $0x78] sm:$0xf]
  %v578 = vld [vmem:[%s3 + $0x7c] sm:$0xf]
  %v579 = vld [vmem:[%s4] sm:$0x1]
  %v581 = vlaneseq
  %v582 = vshrl.u32 %v581, 7
  %v583 = vsub.s32 0, %v582
  %v584 = vrot.slane %v579, %v583
  %v618 = vunpack.c.l.b16 %v547
  %v619 = vunpack.c.l.b16 %v548
  %v620 = vunpack.c.l.b16 %v549
  %v621 = vunpack.c.l.b16 %v550
  %v622 = vunpack.c.l.b16 %v551
  %v623 = vunpack.c.l.b16 %v552
  %v624 = vunpack.c.l.b16 %v553
  %v625 = vunpack.c.l.b16 %v554
  %v626 = vunpack.c.l.b16 %v555
  %v627 = vunpack.c.l.b16 %v556
  %v628 = vunpack.c.l.b16 %v557
  %v629 = vunpack.c.l.b16 %v558
  %v630 = vunpack.c.l.b16 %v559
  %v631 = vunpack.c.l.b16 %v560
  %v632 = vunpack.c.l.b16 %v561
  %v633 = vunpack.c.l.b16 %v562
  %v634 = vunpack.c.l.b16 %v563
  %v635 = vunpack.c.l.b16 %v564
  %v636 = vunpack.c.l.b16 %v565
  %v637 = vunpack.c.l.b16 %v566
  %v638 = vunpack.c.l.b16 %v567
  %v639 = vunpack.c.l.b16 %v568
  %v640 = vunpack.c.l.b16 %v569
  %v641 = vunpack.c.l.b16 %v570
  %v642 = vunpack.c.l.b16 %v571
  %v643 = vunpack.c.l.b16 %v572
  %v644 = vunpack.c.l.b16 %v573
  %v645 = vunpack.c.l.b16 %v574
  %v646 = vunpack.c.l.b16 %v575
  %v647 = vunpack.c.l.b16 %v576
  %v648 = vunpack.c.l.b16 %v577
  %v649 = vunpack.c.l.b16 %v578
  %v650 = vpack.c.b16 %v619, %v618
  %v651 = vpack.c.b16 %v621, %v620
  %v652 = vpack.c.b16 %v623, %v622
  %v653 = vpack.c.b16 %v625, %v624
  %v654 = vpack.c.b16 %v627, %v626
  %v655 = vpack.c.b16 %v629, %v628
  %v656 = vpack.c.b16 %v631, %v630
  %v657 = vpack.c.b16 %v633, %v632
  %v658 = vpack.c.b16 %v635, %v634
  %v659 = vpack.c.b16 %v637, %v636
  %v660 = vpack.c.b16 %v639, %v638
  %v661 = vpack.c.b16 %v641, %v640
  %v662 = vpack.c.b16 %v643, %v642
  %v663 = vpack.c.b16 %v645, %v644
  %v664 = vpack.c.b16 %v647, %v646
  %v665 = vpack.c.b16 %v649, %v648
  %682 = vmatprep.subr.bf16.mxu0 0
  %683 = vmatpush1.bf16.msra.mxu0 %v650
  %684 = vmatprep.subr.bf16.mxu0 0
  %685 = vmatpush1.bf16.msra.mxu0 %v651
  %686 = vmatprep.subr.bf16.mxu0 0
  %687 = vmatpush1.bf16.msra.mxu0 %v652
  %688 = vmatprep.subr.bf16.mxu0 0
  %689 = vmatpush1.bf16.msra.mxu0 %v653
  %690 = vmatprep.subr.bf16.mxu0 0
  %691 = vmatpush1.bf16.msra.mxu0 %v654
  %692 = vmatprep.subr.bf16.mxu0 0
  %693 = vmatpush1.bf16.msra.mxu0 %v655
  %694 = vmatprep.subr.bf16.mxu0 0
  %695 = vmatpush1.bf16.msra.mxu0 %v656
  %696 = vmatprep.subr.bf16.mxu0 0
  %697 = vmatpush1.bf16.msra.mxu0 %v657
  %698 = vmatprep.subr.bf16.mxu0 0
  %699 = vmatpush1.bf16.msra.mxu0 %v658
  %700 = vmatprep.subr.bf16.mxu0 0
  %701 = vmatpush1.bf16.msra.mxu0 %v659
  %702 = vmatprep.subr.bf16.mxu0 0
  %703 = vmatpush1.bf16.msra.mxu0 %v660
  %704 = vmatprep.subr.bf16.mxu0 0
  %705 = vmatpush1.bf16.msra.mxu0 %v661
  %706 = vmatprep.subr.bf16.mxu0 0
  %707 = vmatpush1.bf16.msra.mxu0 %v662
  %708 = vmatprep.subr.bf16.mxu0 0
  %709 = vmatpush1.bf16.msra.mxu0 %v663
  %710 = vmatprep.subr.bf16.mxu0 0
  %711 = vmatpush1.bf16.msra.mxu0 %v664
  %712 = vmatprep.subr.bf16.mxu0 0
  %713 = vmatpush1.bf16.msra.mxu0 %v665
  %714 = vmatprep.mubr.bf16.mxu0 %v546
  %715 = vmatmul.mubr.bf16.gmra.mrb[0].mxu0 %v545
  %v716 = vpop.f32.mrb[0].mxu0
  %v717 = vadd.f32 %v584, %v716
  %v718 = vpop.f32.mrb[0].mxu0
  %v719 = vpop.f32.mrb[0].mxu0
  %v720 = vadd.f32 %v584, %v719
  %v721 = vpop.f32.mrb[0].mxu0
  %722 = vdwg.mxu0
  %723 = vst [vmem:[%s9] sm:$0xff] %v717
  %724 = vst [vmem:[%s9 + $0x8] sm:$0xff] %v720
  %v725 = vpack.c.bf16 %v720, %v717
  %v726 = vld [vmem:[%s5] sm:$0xff]
  %v727 = vld [vmem:[%s5 + $0x8] sm:$0xff]
  %v728 = vld [vmem:[%s5 + $0x10] sm:$0xff]
  %v729 = vld [vmem:[%s5 + $0x18] sm:$0xff]
  %v730 = vld [vmem:[%s5 + $0x20] sm:$0xff]
  %v731 = vld [vmem:[%s5 + $0x28] sm:$0xff]
  %v732 = vld [vmem:[%s5 + $0x30] sm:$0xff]
  %v733 = vld [vmem:[%s5 + $0x38] sm:$0xff]
  %v734 = vld [vmem:[%s5 + $0x40] sm:$0xff]
  %v735 = vld [vmem:[%s5 + $0x48] sm:$0xff]
  %v736 = vld [vmem:[%s5 + $0x50] sm:$0xff]
  %v737 = vld [vmem:[%s5 + $0x58] sm:$0xff]
  %v738 = vld [vmem:[%s5 + $0x60] sm:$0xff]
  %v739 = vld [vmem:[%s5 + $0x68] sm:$0xff]
  %v740 = vld [vmem:[%s5 + $0x70] sm:$0xff]
  %v741 = vld [vmem:[%s5 + $0x78] sm:$0xff]
  %v742 = vld [vmem:[%s6] sm:$0x3]
  %v744 = vlaneseq
  %v745 = vshrl.u32 %v744, 7
  %v746 = vsub.s32 0, %v745
  %v747 = vrot.slane %v742, %v746
  %v748 = vlaneseq
  %v749 = vshrl.u32 %v748, 7
  %v750 = vsub.s32 1, %v749
  %v751 = vrot.slane %v742, %v750
  %v770 = vunpack.c.l.b16 %v726
  %v771 = vunpack.c.h.b16 %v726
  %v772 = vunpack.c.l.b16 %v727
  %v773 = vunpack.c.h.b16 %v727
  %v774 = vunpack.c.l.b16 %v728
  %v775 = vunpack.c.h.b16 %v728
  %v776 = vunpack.c.l.b16 %v729
  %v777 = vunpack.c.h.b16 %v729
  %v778 = vunpack.c.l.b16 %v730
  %v779 = vunpack.c.h.b16 %v730
  %v780 = vunpack.c.l.b16 %v731
  %v781 = vunpack.c.h.b16 %v731
  %v782 = vunpack.c.l.b16 %v732
  %v783 = vunpack.c.h.b16 %v732
  %v784 = vunpack.c.l.b16 %v733
  %v785 = vunpack.c.h.b16 %v733
  %v786 = vunpack.c.l.b16 %v734
  %v787 = vunpack.c.h.b16 %v734
  %v788 = vunpack.c.l.b16 %v735
  %v789 = vunpack.c.h.b16 %v735
  %v790 = vunpack.c.l.b16 %v736
  %v791 = vunpack.c.h.b16 %v736
  %v792 = vunpack.c.l.b16 %v737
  %v793 = vunpack.c.h.b16 %v737
  %v794 = vunpack.c.l.b16 %v738
  %v795 = vunpack.c.h.b16 %v738
  %v796 = vunpack.c.l.b16 %v739
  %v797 = vunpack.c.h.b16 %v739
  %v798 = vunpack.c.l.b16 %v740
  %v799 = vunpack.c.h.b16 %v740
  %v800 = vunpack.c.l.b16 %v741
  %v801 = vunpack.c.h.b16 %v741
  %v802 = vpack.c.b16 %v772, %v770
  %v803 = vpack.c.b16 %v773, %v771
  %v804 = vpack.c.b16 %v776, %v774
  %v805 = vpack.c.b16 %v777, %v775
  %v806 = vpack.c.b16 %v780, %v778
  %v807 = vpack.c.b16 %v781, %v779
  %v808 = vpack.c.b16 %v784, %v782
  %v809 = vpack.c.b16 %v785, %v783
  %v810 = vpack.c.b16 %v788, %v786
  %v811 = vpack.c.b16 %v789, %v787
  %v812 = vpack.c.b16 %v792, %v790
  %v813 = vpack.c.b16 %v793, %v791
  %v814 = vpack.c.b16 %v796, %v794
  %v815 = vpack.c.b16 %v797, %v795
  %v816 = vpack.c.b16 %v800, %v798
  %v817 = vpack.c.b16 %v801, %v799
  %834 = vmatprep.subr.bf16.mxu0 %v803
  %835 = vmatpush1.bf16.msra.mxu0 %v802
  %836 = vmatprep.subr.bf16.mxu0 %v805
  %837 = vmatpush1.bf16.msra.mxu0 %v804
  %838 = vmatprep.subr.bf16.mxu0 %v807
  %839 = vmatpush1.bf16.msra.mxu0 %v806
  %840 = vmatprep.subr.bf16.mxu0 %v809
  %841 = vmatpush1.bf16.msra.mxu0 %v808
  %842 = vmatprep.subr.bf16.mxu0 %v811
  %843 = vmatpush1.bf16.msra.mxu0 %v810
  %844 = vmatprep.subr.bf16.mxu0 %v813
  %845 = vmatpush1.bf16.msra.mxu0 %v812
  %846 = vmatprep.subr.bf16.mxu0 %v815
  %847 = vmatpush1.bf16.msra.mxu0 %v814
  %848 = vmatprep.subr.bf16.mxu0 %v817
  %849 = vmatpush1.bf16.msra.mxu0 %v816
  %850 = vmatprep.subr.bf16.mxu0 0
  %851 = vmatpush1.bf16.msra.mxu0 0
  %852 = vmatprep.subr.bf16.mxu0 0
  %853 = vmatpush1.bf16.msra.mxu0 0
  %854 = vmatprep.subr.bf16.mxu0 0
  %855 = vmatpush1.bf16.msra.mxu0 0
  %856 = vmatprep.subr.bf16.mxu0 0
  %857 = vmatpush1.bf16.msra.mxu0 0
  %858 = vmatprep.subr.bf16.mxu0 0
  %859 = vmatpush1.bf16.msra.mxu0 0
  %860 = vmatprep.subr.bf16.mxu0 0
  %861 = vmatpush1.bf16.msra.mxu0 0
  %862 = vmatprep.subr.bf16.mxu0 0
  %863 = vmatpush1.bf16.msra.mxu0 0
  %864 = vmatprep.subr.bf16.mxu0 0
  %865 = vmatpush1.bf16.msra.mxu0 0
  %866 = vmatprep.mubr.bf16.mxu0 0
  %867 = vmatmul.mubr.bf16.gmra.mrb[0].mxu0 %v725
  %v868 = vpop.f32.mrb[0].mxu0
  %v869 = vadd.f32 %v747, %v868
  %v870 = vpop.f32.mrb[0].mxu0
  %v871 = vadd.f32 %v751, %v870
  %v872 = vpop.f32.mrb[0].mxu0
  %v873 = vadd.f32 %v747, %v872
  %v874 = vpop.f32.mrb[0].mxu0
  %v875 = vadd.f32 %v751, %v874
  %876 = vdwg.mxu0
  %v877 = vmax.f32 %v869, 0.0
  %v878 = vmax.f32 %v871, 0.0
  %v879 = vmax.f32 %v873, 0.0
  %v880 = vmax.f32 %v875, 0.0
  %v881 = vpack.c.bf16 %v879, %v877
  %v882 = vpack.c.bf16 %v880, %v878
  %v883 = vld [vmem:[%s7] sm:$0xff]
  %v884 = vld [vmem:[%s7 + $0x8] sm:$0xff]
  %v885 = vld [vmem:[%s7 + $0x10] sm:$0xff]
  %v886 = vld [vmem:[%s7 + $0x18] sm:$0xff]
  %v887 = vld [vmem:[%s7 + $0x20] sm:$0xff]
  %v888 = vld [vmem:[%s7 + $0x28] sm:$0xff]
  %v889 = vld [vmem:[%s7 + $0x30] sm:$0xff]
  %v890 = vld [vmem:[%s7 + $0x38] sm:$0xff]
  %v891 = vld [vmem:[%s7 + $0x40] sm:$0xff]
  %v892 = vld [vmem:[%s7 + $0x48] sm:$0xff]
  %v893 = vld [vmem:[%s7 + $0x50] sm:$0xff]
  %v894 = vld [vmem:[%s7 + $0x58] sm:$0xff]
  %v895 = vld [vmem:[%s7 + $0x60] sm:$0xff]
  %v896 = vld [vmem:[%s7 + $0x68] sm:$0xff]
  %v897 = vld [vmem:[%s7 + $0x70] sm:$0xff]
  %v898 = vld [vmem:[%s7 + $0x78] sm:$0xff]
  %v899 = vld [vmem:[%s7 + $0x80] sm:$0xff]
  %v900 = vld [vmem:[%s7 + $0x88] sm:$0xff]
  %v901 = vld [vmem:[%s7 + $0x90] sm:$0xff]
  %v902 = vld [vmem:[%s7 + $0x98] sm:$0xff]
  %v903 = vld [vmem:[%s7 + $0xa0] sm:$0xff]
  %v904 = vld [vmem:[%s7 + $0xa8] sm:$0xff]
  %v905 = vld [vmem:[%s7 + $0xb0] sm:$0xff]
  %v906 = vld [vmem:[%s7 + $0xb8] sm:$0xff]
  %v907 = vld [vmem:[%s7 + $0xc0] sm:$0xff]
  %v908 = vld [vmem:[%s7 + $0xc8] sm:$0xff]
  %v909 = vld [vmem:[%s7 + $0xd0] sm:$0xff]
  %v910 = vld [vmem:[%s7 + $0xd8] sm:$0xff]
  %v911 = vld [vmem:[%s7 + $0xe0] sm:$0xff]
  %v912 = vld [vmem:[%s7 + $0xe8] sm:$0xff]
  %v913 = vld [vmem:[%s7 + $0xf0] sm:$0xff]
  %v914 = vld [vmem:[%s7 + $0xf8] sm:$0xff]
  %v915 = vld [vmem:[%s7 + $0x100] sm:$0xff]
  %v916 = vld [vmem:[%s7 + $0x108] sm:$0xff]
  %v917 = vld [vmem:[%s7 + $0x110] sm:$0xff]
  %v918 = vld [vmem:[%s7 + $0x118] sm:$0xff]
  %v919 = vld [vmem:[%s7 + $0x120] sm:$0xff]
  %v920 = vld [vmem:[%s7 + $0x128] sm:$0xff]
  %v921 = vld [vmem:[%s7 + $0x130] sm:$0xff]
  %v922 = vld [vmem:[%s7 + $0x138] sm:$0xff]
  %v923 = vld [vmem:[%s7 + $0x140] sm:$0xff]
  %v924 = vld [vmem:[%s7 + $0x148] sm:$0xff]
  %v925 = vld [vmem:[%s7 + $0x150] sm:$0xff]
  %v926 = vld [vmem:[%s7 + $0x158] sm:$0xff]
  %v927 = vld [vmem:[%s7 + $0x160] sm:$0xff]
  %v928 = vld [vmem:[%s7 + $0x168] sm:$0xff]
  %v929 = vld [vmem:[%s7 + $0x170] sm:$0xff]
  %v930 = vld [vmem:[%s7 + $0x178] sm:$0xff]
  %v931 = vld [vmem:[%s7 + $0x180] sm:$0xff]
  %v932 = vld [vmem:[%s7 + $0x188] sm:$0xff]
  %v933 = vld [vmem:[%s7 + $0x190] sm:$0xff]
  %v934 = vld [vmem:[%s7 + $0x198] sm:$0xff]
  %v935 = vld [vmem:[%s7 + $0x1a0] sm:$0xff]
  %v936 = vld [vmem:[%s7 + $0x1a8] sm:$0xff]
  %v937 = vld [vmem:[%s7 + $0x1b0] sm:$0xff]
  %v938 = vld [vmem:[%s7 + $0x1b8] sm:$0xff]
  %v939 = vld [vmem:[%s7 + $0x1c0] sm:$0xff]
  %v940 = vld [vmem:[%s7 + $0x1c8] sm:$0xff]
  %v941 = vld [vmem:[%s7 + $0x1d0] sm:$0xff]
  %v942 = vld [vmem:[%s7 + $0x1d8] sm:$0xff]
  %v943 = vld [vmem:[%s7 + $0x1e0] sm:$0xff]
  %v944 = vld [vmem:[%s7 + $0x1e8] sm:$0xff]
  %v945 = vld [vmem:[%s7 + $0x1f0] sm:$0xff]
  %v946 = vld [vmem:[%s7 + $0x1f8] sm:$0xff]
  %v947 = vld [vmem:[%s8] sm:$0xf]
  %v949 = vlaneseq
  %v950 = vshrl.u32 %v949, 7
  %v951 = vsub.s32 0, %v950
  %v952 = vrot.slane %v947, %v951
  %v953 = vlaneseq
  %v954 = vshrl.u32 %v953, 7
  %v955 = vsub.s32 1, %v954
  %v956 = vrot.slane %v947, %v955
  %v957 = vlaneseq
  %v958 = vshrl.u32 %v957, 7
  %v959 = vsub.s32 2, %v958
  %v960 = vrot.slane %v947, %v959
  %v961 = vlaneseq
  %v962 = vshrl.u32 %v961, 7
  %v963 = vsub.s32 3, %v962
  %v964 = vrot.slane %v947, %v963
  %v1033 = vunpack.c.l.b16 %v883
  %v1034 = vunpack.c.h.b16 %v883
  %v1035 = vunpack.c.l.b16 %v884
  %v1036 = vunpack.c.h.b16 %v884
  %v1037 = vunpack.c.l.b16 %v885
  %v1038 = vunpack.c.h.b16 %v885
  %v1039 = vunpack.c.l.b16 %v886
  %v1040 = vunpack.c.h.b16 %v886
  %v1041 = vunpack.c.l.b16 %v887
  %v1042 = vunpack.c.h.b16 %v887
  %v1043 = vunpack.c.l.b16 %v888
  %v1044 = vunpack.c.h.b16 %v888
  %v1045 = vunpack.c.l.b16 %v889
  %v1046 = vunpack.c.h.b16 %v889
  %v1047 = vunpack.c.l.b16 %v890
  %v1048 = vunpack.c.h.b16 %v890
  %v1049 = vunpack.c.l.b16 %v891
  %v1050 = vunpack.c.h.b16 %v891
  %v1051 = vunpack.c.l.b16 %v892
  %v1052 = vunpack.c.h.b16 %v892
  %v1053 = vunpack.c.l.b16 %v893
  %v1054 = vunpack.c.h.b16 %v893
  %v1055 = vunpack.c.l.b16 %v894
  %v1056 = vunpack.c.h.b16 %v894
  %v1057 = vunpack.c.l.b16 %v895
  %v1058 = vunpack.c.h.b16 %v895
  %v1059 = vunpack.c.l.b16 %v896
  %v1060 = vunpack.c.h.b16 %v896
  %v1061 = vunpack.c.l.b16 %v897
  %v1062 = vunpack.c.h.b16 %v897
  %v1063 = vunpack.c.l.b16 %v898
  %v1064 = vunpack.c.h.b16 %v898
  %v1065 = vunpack.c.l.b16 %v899
  %v1066 = vunpack.c.h.b16 %v899
  %v1067 = vunpack.c.l.b16 %v900
  %v1068 = vunpack.c.h.b16 %v900
  %v1069 = vunpack.c.l.b16 %v901
  %v1070 = vunpack.c.h.b16 %v901
  %v1071 = vunpack.c.l.b16 %v902
  %v1072 = vunpack.c.h.b16 %v902
  %v1073 = vunpack.c.l.b16 %v903
  %v1074 = vunpack.c.h.b16 %v903
  %v1075 = vunpack.c.l.b16 %v904
  %v1076 = vunpack.c.h.b16 %v904
  %v1077 = vunpack.c.l.b16 %v905
  %v1078 = vunpack.c.h.b16 %v905
  %v1079 = vunpack.c.l.b16 %v906
  %v1080 = vunpack.c.h.b16 %v906
  %v1081 = vunpack.c.l.b16 %v907
  %v1082 = vunpack.c.h.b16 %v907
  %v1083 = vunpack.c.l.b16 %v908
  %v1084 = vunpack.c.h.b16 %v908
  %v1085 = vunpack.c.l.b16 %v909
  %v1086 = vunpack.c.h.b16 %v909
  %v1087 = vunpack.c.l.b16 %v910
  %v1088 = vunpack.c.h.b16 %v910
  %v1089 = vunpack.c.l.b16 %v911
  %v1090 = vunpack.c.h.b16 %v911
  %v1091 = vunpack.c.l.b16 %v912
  %v1092 = vunpack.c.h.b16 %v912
  %v1093 = vunpack.c.l.b16 %v913
  %v1094 = vunpack.c.h.b16 %v913
  %v1095 = vunpack.c.l.b16 %v914
  %v1096 = vunpack.c.h.b16 %v914
  %v1097 = vunpack.c.l.b16 %v915
  %v1098 = vunpack.c.h.b16 %v915
  %v1099 = vunpack.c.l.b16 %v916
  %v1100 = vunpack.c.h.b16 %v916
  %v1101 = vunpack.c.l.b16 %v917
  %v1102 = vunpack.c.h.b16 %v917
  %v1103 = vunpack.c.l.b16 %v918
  %v1104 = vunpack.c.h.b16 %v918
  %v1105 = vunpack.c.l.b16 %v919
  %v1106 = vunpack.c.h.b16 %v919
  %v1107 = vunpack.c.l.b16 %v920
  %v1108 = vunpack.c.h.b16 %v920
  %v1109 = vunpack.c.l.b16 %v921
  %v1110 = vunpack.c.h.b16 %v921
  %v1111 = vunpack.c.l.b16 %v922
  %v1112 = vunpack.c.h.b16 %v922
  %v1113 = vunpack.c.l.b16 %v923
  %v1114 = vunpack.c.h.b16 %v923
  %v1115 = vunpack.c.l.b16 %v924
  %v1116 = vunpack.c.h.b16 %v924
  %v1117 = vunpack.c.l.b16 %v925
  %v1118 = vunpack.c.h.b16 %v925
  %v1119 = vunpack.c.l.b16 %v926
  %v1120 = vunpack.c.h.b16 %v926
  %v1121 = vunpack.c.l.b16 %v927
  %v1122 = vunpack.c.h.b16 %v927
  %v1123 = vunpack.c.l.b16 %v928
  %v1124 = vunpack.c.h.b16 %v928
  %v1125 = vunpack.c.l.b16 %v929
  %v1126 = vunpack.c.h.b16 %v929
  %v1127 = vunpack.c.l.b16 %v930
  %v1128 = vunpack.c.h.b16 %v930
  %v1129 = vunpack.c.l.b16 %v931
  %v1130 = vunpack.c.h.b16 %v931
  %v1131 = vunpack.c.l.b16 %v932
  %v1132 = vunpack.c.h.b16 %v932
  %v1133 = vunpack.c.l.b16 %v933
  %v1134 = vunpack.c.h.b16 %v933
  %v1135 = vunpack.c.l.b16 %v934
  %v1136 = vunpack.c.h.b16 %v934
  %v1137 = vunpack.c.l.b16 %v935
  %v1138 = vunpack.c.h.b16 %v935
  %v1139 = vunpack.c.l.b16 %v936
  %v1140 = vunpack.c.h.b16 %v936
  %v1141 = vunpack.c.l.b16 %v937
  %v1142 = vunpack.c.h.b16 %v937
  %v1143 = vunpack.c.l.b16 %v938
  %v1144 = vunpack.c.h.b16 %v938
  %v1145 = vunpack.c.l.b16 %v939
  %v1146 = vunpack.c.h.b16 %v939
  %v1147 = vunpack.c.l.b16 %v940
  %v1148 = vunpack.c.h.b16 %v940
  %v1149 = vunpack.c.l.b16 %v941
  %v1150 = vunpack.c.h.b16 %v941
  %v1151 = vunpack.c.l.b16 %v942
  %v1152 = vunpack.c.h.b16 %v942
  %v1153 = vunpack.c.l.b16 %v943
  %v1154 = vunpack.c.h.b16 %v943
  %v1155 = vunpack.c.l.b16 %v944
  %v1156 = vunpack.c.h.b16 %v944
  %v1157 = vunpack.c.l.b16 %v945
  %v1158 = vunpack.c.h.b16 %v945
  %v1159 = vunpack.c.l.b16 %v946
  %v1160 = vunpack.c.h.b16 %v946
  %v1161 = vpack.c.b16 %v1037, %v1033
  %v1162 = vpack.c.b16 %v1038, %v1034
  %v1163 = vpack.c.b16 %v1039, %v1035
  %v1164 = vpack.c.b16 %v1040, %v1036
  %v1165 = vpack.c.b16 %v1045, %v1041
  %v1166 = vpack.c.b16 %v1046, %v1042
  %v1167 = vpack.c.b16 %v1047, %v1043
  %v1168 = vpack.c.b16 %v1048, %v1044
  %v1169 = vpack.c.b16 %v1053, %v1049
  %v1170 = vpack.c.b16 %v1054, %v1050
  %v1171 = vpack.c.b16 %v1055, %v1051
  %v1172 = vpack.c.b16 %v1056, %v1052
  %v1173 = vpack.c.b16 %v1061, %v1057
  %v1174 = vpack.c.b16 %v1062, %v1058
  %v1175 = vpack.c.b16 %v1063, %v1059
  %v1176 = vpack.c.b16 %v1064, %v1060
  %v1177 = vpack.c.b16 %v1069, %v1065
  %v1178 = vpack.c.b16 %v1070, %v1066
  %v1179 = vpack.c.b16 %v1071, %v1067
  %v1180 = vpack.c.b16 %v1072, %v1068
  %v1181 = vpack.c.b16 %v1077, %v1073
  %v1182 = vpack.c.b16 %v1078, %v1074
  %v1183 = vpack.c.b16 %v1079, %v1075
  %v1184 = vpack.c.b16 %v1080, %v1076
  %v1185 = vpack.c.b16 %v1085, %v1081
  %v1186 = vpack.c.b16 %v1086, %v1082
  %v1187 = vpack.c.b16 %v1087, %v1083
  %v1188 = vpack.c.b16 %v1088, %v1084
  %v1189 = vpack.c.b16 %v1093, %v1089
  %v1190 = vpack.c.b16 %v1094, %v1090
  %v1191 = vpack.c.b16 %v1095, %v1091
  %v1192 = vpack.c.b16 %v1096, %v1092
  %v1193 = vpack.c.b16 %v1101, %v1097
  %v1194 = vpack.c.b16 %v1102, %v1098
  %v1195 = vpack.c.b16 %v1103, %v1099
  %v1196 = vpack.c.b16 %v1104, %v1100
  %v1197 = vpack.c.b16 %v1109, %v1105
  %v1198 = vpack.c.b16 %v1110, %v1106
  %v1199 = vpack.c.b16 %v1111, %v1107
  %v1200 = vpack.c.b16 %v1112, %v1108
  %v1201 = vpack.c.b16 %v1117, %v1113
  %v1202 = vpack.c.b16 %v1118, %v1114
  %v1203 = vpack.c.b16 %v1119, %v1115
  %v1204 = vpack.c.b16 %v1120, %v1116
  %v1205 = vpack.c.b16 %v1125, %v1121
  %v1206 = vpack.c.b16 %v1126, %v1122
  %v1207 = vpack.c.b16 %v1127, %v1123
  %v1208 = vpack.c.b16 %v1128, %v1124
  %v1209 = vpack.c.b16 %v1133, %v1129
  %v1210 = vpack.c.b16 %v1134, %v1130
  %v1211 = vpack.c.b16 %v1135, %v1131
  %v1212 = vpack.c.b16 %v1136, %v1132
  %v1213 = vpack.c.b16 %v1141, %v1137
  %v1214 = vpack.c.b16 %v1142, %v1138
  %v1215 = vpack.c.b16 %v1143, %v1139
  %v1216 = vpack.c.b16 %v1144, %v1140
  %v1217 = vpack.c.b16 %v1149, %v1145
  %v1218 = vpack.c.b16 %v1150, %v1146
  %v1219 = vpack.c.b16 %v1151, %v1147
  %v1220 = vpack.c.b16 %v1152, %v1148
  %v1221 = vpack.c.b16 %v1157, %v1153
  %v1222 = vpack.c.b16 %v1158, %v1154
  %v1223 = vpack.c.b16 %v1159, %v1155
  %v1224 = vpack.c.b16 %v1160, %v1156
  %1289 = vmatprep.subr.bf16.mxu0 %v1162
  %1290 = vmatpush1.bf16.msra.mxu0 %v1161
  %1291 = vmatprep.subr.bf16.mxu0 %v1166
  %1292 = vmatpush1.bf16.msra.mxu0 %v1165
  %1293 = vmatprep.subr.bf16.mxu0 %v1170
  %1294 = vmatpush1.bf16.msra.mxu0 %v1169
  %1295 = vmatprep.subr.bf16.mxu0 %v1174
  %1296 = vmatpush1.bf16.msra.mxu0 %v1173
  %1297 = vmatprep.subr.bf16.mxu0 %v1178
  %1298 = vmatpush1.bf16.msra.mxu0 %v1177
  %1299 = vmatprep.subr.bf16.mxu0 %v1182
  %1300 = vmatpush1.bf16.msra.mxu0 %v1181
  %1301 = vmatprep.subr.bf16.mxu0 %v1186
  %1302 = vmatpush1.bf16.msra.mxu0 %v1185
  %1303 = vmatprep.subr.bf16.mxu0 %v1190
  %1304 = vmatpush1.bf16.msra.mxu0 %v1189
  %1305 = vmatprep.subr.bf16.mxu0 %v1194
  %1306 = vmatpush1.bf16.msra.mxu0 %v1193
  %1307 = vmatprep.subr.bf16.mxu0 %v1198
  %1308 = vmatpush1.bf16.msra.mxu0 %v1197
  %1309 = vmatprep.subr.bf16.mxu0 %v1202
  %1310 = vmatpush1.bf16.msra.mxu0 %v1201
  %1311 = vmatprep.subr.bf16.mxu0 %v1206
  %1312 = vmatpush1.bf16.msra.mxu0 %v1205
  %1313 = vmatprep.subr.bf16.mxu0 %v1210
  %1314 = vmatpush1.bf16.msra.mxu0 %v1209
  %1315 = vmatprep.subr.bf16.mxu0 %v1214
  %1316 = vmatpush1.bf16.msra.mxu0 %v1213
  %1317 = vmatprep.subr.bf16.mxu0 %v1218
  %1318 = vmatpush1.bf16.msra.mxu0 %v1217
  %1319 = vmatprep.subr.bf16.mxu0 %v1222
  %1320 = vmatpush1.bf16.msra.mxu0 %v1221
  %1321 = vmatprep.mubr.bf16.mxu0 %v882
  %1322 = vmatmul.mubr.bf16.gmra.mrb[0].mxu0 %v881
  %v1323 = vpop.f32.mrb[0].mxu0
  %v1324 = vadd.f32 %v952, %v1323
  %v1325 = vpop.f32.mrb[0].mxu0
  %v1326 = vadd.f32 %v956, %v1325
  %v1327 = vpop.f32.mrb[0].mxu0
  %v1328 = vadd.f32 %v952, %v1327
  %v1329 = vpop.f32.mrb[0].mxu0
  %v1330 = vadd.f32 %v956, %v1329
  %1331 = vdwg.mxu0
  %1332 = vmatprep.subr.bf16.mxu0 %v1164
  %1333 = vmatpush1.bf16.msra.mxu0 %v1163
  %1334 = vmatprep.subr.bf16.mxu0 %v1168
  %1335 = vmatpush1.bf16.msra.mxu0 %v1167
  %1336 = vmatprep.subr.bf16.mxu0 %v1172
  %1337 = vmatpush1.bf16.msra.mxu0 %v1171
  %1338 = vmatprep.subr.bf16.mxu0 %v1176
  %1339 = vmatpush1.bf16.msra.mxu0 %v1175
  %1340 = vmatprep.subr.bf16.mxu0 %v1180
  %1341 = vmatpush1.bf16.msra.mxu0 %v1179
  %1342 = vmatprep.subr.bf16.mxu0 %v1184
  %1343 = vmatpush1.bf16.msra.mxu0 %v1183
  %1344 = vmatprep.subr.bf16.mxu0 %v1188
  %1345 = vmatpush1.bf16.msra.mxu0 %v1187
  %1346 = vmatprep.subr.bf16.mxu0 %v1192
  %1347 = vmatpush1.bf16.msra.mxu0 %v1191
  %1348 = vmatprep.subr.bf16.mxu0 %v1196
  %1349 = vmatpush1.bf16.msra.mxu0 %v1195
  %1350 = vmatprep.subr.bf16.mxu0 %v1200
  %1351 = vmatpush1.bf16.msra.mxu0 %v1199
  %1352 = vmatprep.subr.bf16.mxu0 %v1204
  %1353 = vmatpush1.bf16.msra.mxu0 %v1203
  %1354 = vmatprep.subr.bf16.mxu0 %v1208
  %1355 = vmatpush1.bf16.msra.mxu0 %v1207
  %1356 = vmatprep.subr.bf16.mxu0 %v1212
  %1357 = vmatpush1.bf16.msra.mxu0 %v1211
  %1358 = vmatprep.subr.bf16.mxu0 %v1216
  %1359 = vmatpush1.bf16.msra.mxu0 %v1215
  %1360 = vmatprep.subr.bf16.mxu0 %v1220
  %1361 = vmatpush1.bf16.msra.mxu0 %v1219
  %1362 = vmatprep.subr.bf16.mxu0 %v1224
  %1363 = vmatpush1.bf16.msra.mxu0 %v1223
  %1364 = vmatprep.mubr.bf16.mxu0 %v882
  %1365 = vmatmul.mubr.bf16.gmra.mrb[0].mxu0 %v881
  %v1366 = vpop.f32.mrb[0].mxu0
  %v1367 = vadd.f32 %v960, %v1366
  %v1368 = vpop.f32.mrb[0].mxu0
  %v1369 = vadd.f32 %v964, %v1368
  %v1370 = vpop.f32.mrb[0].mxu0
  %v1371 = vadd.f32 %v960, %v1370
  %v1372 = vpop.f32.mrb[0].mxu0
  %v1373 = vadd.f32 %v964, %v1372
  %1374 = vdwg.mxu0
  %1375 = vst [vmem:[%s10] sm:$0xff] %v1324
  %1376 = vst [vmem:[%s10 + $0x8] sm:$0xff] %v1326
  %1377 = vst [vmem:[%s10 + $0x10] sm:$0xff] %v1367
  %1378 = vst [vmem:[%s10 + $0x18] sm:$0xff] %v1369
  %1379 = vst [vmem:[%s10 + $0x20] sm:$0xff] %v1328
  %1380 = vst [vmem:[%s10 + $0x28] sm:$0xff] %v1330
  %1381 = vst [vmem:[%s10 + $0x30] sm:$0xff] %v1371
  %1382 = vst [vmem:[%s10 + $0x38] sm:$0xff] %v1373
  // Predicated region
  $region38: #{autoencoder_forward.1} parent=0 // pred_check
    _
  $region39: #{autoencoder_forward.1} parent=0 // pred_check_branch
    %1384 = sbr.rel (0) target = $region41
  $region40: #{autoencoder_forward.1} parent=0 // pred_region
    _
  $region41: #{autoencoder_forward.1} parent=0 // pred_fallthru
    _
  // Predicated region
  $region42: #{autoencoder_forward.1} parent=0 // pred_check
    _
  $region43: #{autoencoder_forward.1} parent=0 // pred_check_branch
    %1386 = sbr.rel (0) target = $region45
  $region44: #{autoencoder_forward.1} parent=0 // pred_region
    _
  $region45: #{autoencoder_forward.1} parent=0 // pred_fallthru
    _
  // Predicated region
  $region46: #{autoencoder_forward.1} parent=0 // pred_check
    _
  $region47: #{autoencoder_forward.1} parent=0 // pred_check_branch
    %1388 = sbr.rel (0) target = $region49
  $region48: #{autoencoder_forward.1} parent=0 // pred_region
    _
  $region49: #{autoencoder_forward.1} parent=0 // pred_fallthru
    _
  // Predicated region
  $region50: #{autoencoder_forward.1} parent=0 // pred_check
    _
  $region51: #{autoencoder_forward.1} parent=0 // pred_check_branch
    %1390 = sbr.rel (0) target = $region53
  $region52: #{autoencoder_forward.1} parent=0 // pred_region
    _
  $region53: #{autoencoder_forward.1} parent=0 // pred_fallthru
    _

</llo_original>
